<compile_context>
chip_gen: v7x
topology: tpu7x:2x2x1
jax: 0.10.0
libtpu: 0.0.40
codegen_flags: <defaults>
</compile_context>

<pallas_src>
import functools

import jax
import jax.numpy as jnp
from jax import lax
from jax.experimental import pallas as pl
from jax.experimental.pallas import tpu as pltpu


def _gnn_kernel(step, Hp,
                a_in_ref, a_out_ref, h_ref,
                w_ein_ref, w_eout_ref, w_ia_ref, w_ib_ref, w_hh_ref,
                b_ein_ref, b_eout_ref, b_r_ref, b_z_ref, b_in_ref, b_hn_ref,
                out_ref):
    Bt, Np, _ = a_in_ref.shape
    M = Bt * Np
    f32 = jnp.float32

    # ---- hoisted loads (once per grid step, outside the step loop) ----
    w_ein = w_ein_ref[...]                       # [Hp, Hp]   bf16, pre-transposed
    w_eout = w_eout_ref[...]                     # [Hp, Hp]
    w_ia = w_ia_ref[...]                         # [Hp, 3Hp]  acts on A_in aggregation
    w_ib = w_ib_ref[...]                         # [Hp, 3Hp]  acts on A_out aggregation
    w_hh = w_hh_ref[...]                         # [Hp, 3Hp]  acts on hidden
    # per-gate slices (lane-aligned at multiples of 128, hoisted)
    wia_r, wia_z, wia_n = w_ia[:, :Hp], w_ia[:, Hp:2 * Hp], w_ia[:, 2 * Hp:]
    wib_r, wib_z, wib_n = w_ib[:, :Hp], w_ib[:, Hp:2 * Hp], w_ib[:, 2 * Hp:]
    whh_r, whh_z, whh_n = w_hh[:, :Hp], w_hh[:, Hp:2 * Hp], w_hh[:, 2 * Hp:]

    b_ein = b_ein_ref[...]                       # (1, Hp) f32 — implicit broadcast
    b_eout = b_eout_ref[...]
    b_r = b_r_ref[...]                           # b_ih_eff[r] + b_hh[r]
    b_z = b_z_ref[...]                           # b_ih_eff[z] + b_hh[z]
    b_in = b_in_ref[...]                         # b_ih_eff[n]
    b_hn = b_hn_ref[...]                         # b_hh[n]

    a_in = a_in_ref[...]                         # [Bt, Np, Np] f32
    a_out = a_out_ref[...]

    def mm(x, w):
        return jnp.dot(x, w, preferred_element_type=f32)

    def cell(h2):
        # h2: [M, Hp] f32 with M = Bt*Np collapsed into the matmul M dimension.
        hb = h2.astype(jnp.bfloat16)

        edge_in = mm(hb, w_ein) + b_ein          # [M, Hp] f32
        edge_out = mm(hb, w_eout) + b_eout

        # Adjacency aggregation: Bt small [Np,Np]x[Np,Hp] matmuls (f32).
        # b_iah / b_oah were folded into the gate biases host-side.
        agg_in = jnp.einsum('bmn,bnh->bmh', a_in, edge_in.reshape(Bt, Np, Hp),
                            preferred_element_type=f32).reshape(M, Hp)
        agg_out = jnp.einsum('bmn,bnh->bmh', a_out, edge_out.reshape(Bt, Np, Hp),
                             preferred_element_type=f32).reshape(M, Hp)
        ai = agg_in.astype(jnp.bfloat16)
        ao = agg_out.astype(jnp.bfloat16)

        # Per-gate matmuls with fused activations (no [M, 3Hp] gi/gh buffers).
        r = jax.nn.sigmoid(mm(ai, wia_r) + mm(ao, wib_r) + mm(hb, whh_r) + b_r)
        z = jax.nn.sigmoid(mm(ai, wia_z) + mm(ao, wib_z) + mm(hb, whh_z) + b_z)
        i_n = mm(ai, wia_n) + mm(ao, wib_n) + b_in
        h_n = mm(hb, whh_n) + b_hn
        n = jnp.tanh(i_n + r * h_n)
        return n + z * (h2 - n)

    h2 = h_ref[...].reshape(M, Hp)
    if step == 1:
        h2 = cell(h2)
    else:
        h2 = lax.fori_loop(0, step, lambda _, h: cell(h), h2, unroll=True)

    out_ref[...] = h2.reshape(Bt, Np, Hp).astype(out_ref.dtype)


def gnn_forward(A, hidden, params, *, step=1):
    """A: [B, N, 2N] f32, hidden: [B, N, H] f32 -> [B, N, H] f32."""
    B, N, H = hidden.shape
    assert A.shape == (B, N, 2 * N)

    LANE, SUB = 128, 8
    Hp = ((H + LANE - 1) // LANE) * LANE          # lane-dense hidden width
    Np = ((N + SUB - 1) // SUB) * SUB             # sublane-aligned node count

    # ---- host-side layout work (done once, outside the kernel) ----
    A_in = A[:, :, :N]                            # [B, N, N]
    A_out = A[:, :, N:2 * N]
    if Np != N:
        A_in = jnp.pad(A_in, ((0, 0), (0, Np - N), (0, Np - N)))
        A_out = jnp.pad(A_out, ((0, 0), (0, Np - N), (0, Np - N)))
    hidden_p = jnp.pad(hidden, ((0, 0), (0, Np - N), (0, Hp - H)))

    # Batch tile: collapsed matmul rows M = Bt*Np target ~1024; keep >= 2 grid
    # iterations when B > 1 so both v7x TensorCores are used.
    Bt = max(1, min(B, 1024 // Np))
    if B > 1:
        Bt = min(Bt, pl.cdiv(B, 2))
    Bp = pl.cdiv(B, Bt) * Bt
    if Bp != B:
        padb = ((0, Bp - B), (0, 0), (0, 0))
        A_in = jnp.pad(A_in, padb)
        A_out = jnp.pad(A_out, padb)
        hidden_p = jnp.pad(hidden_p, padb)

    # ---- weight / bias prep (f32 math on host, bf16 weights into kernel) ----
    w_ih = params["w_ih"]                         # (3H, 2H)
    w_hh = params["w_hh"]                         # (3H, H)
    b_hh = params["b_hh"]                         # (3H,)
    # fold b_iah / b_oah into the gate bias (they only feed the gi matmul)
    b_ih_eff = (params["b_ih"]
                + w_ih[:, :H] @ params["b_iah"]
                + w_ih[:, H:] @ params["b_oah"])

    def pad_mat(w_t):                             # pre-transposed (H, H) -> (Hp, Hp)
        return jnp.pad(w_t, ((0, Hp - H), (0, Hp - H)))

    def gate_stack(w3h_h):                        # (3H, H) -> (Hp, 3Hp), per-gate padded
        out = jnp.zeros((Hp, 3 * Hp), jnp.float32)
        for g in range(3):
            out = out.at[:H, g * Hp:g * Hp + H].set(w3h_h[g * H:(g + 1) * H, :].T)
        return out

    def pad_vec(v):                               # (H,) -> (1, Hp) f32
        return jnp.pad(v, (0, Hp - H)).reshape(1, Hp).astype(jnp.float32)

    bf = lambda x: x.astype(jnp.bfloat16)
    w_ein = bf(pad_mat(params["w_edge_in"].T))
    w_eout = bf(pad_mat(params["w_edge_out"].T))
    w_ia = bf(gate_stack(w_ih[:, :H]))            # input_in half
    w_ib = bf(gate_stack(w_ih[:, H:]))            # input_out half
    w_hh_s = bf(gate_stack(w_hh))

    b_ein = pad_vec(params["b_edge_in"])
    b_eout = pad_vec(params["b_edge_out"])
    b_r = pad_vec(b_ih_eff[:H] + b_hh[:H])
    b_z = pad_vec(b_ih_eff[H:2 * H] + b_hh[H:2 * H])
    b_in = pad_vec(b_ih_eff[2 * H:])
    b_hn = pad_vec(b_hh[2 * H:])

    kernel = functools.partial(_gnn_kernel, step, Hp)
    wspec = lambda shp: pl.BlockSpec(shp, lambda b: (0,) * len(shp))

    # advisory cost estimate (11 weight matmuls + adjacency + gates)
    M_total = Bp * Np
    flops = int(step * (22 * M_total * Hp * Hp + 4 * Bp * Np * Np * Hp))
    transcendentals = int(step * M_total * 3 * Hp)
    bytes_accessed = int(
        4 * (A_in.size + A_out.size + 2 * hidden_p.size)
        + 2 * (w_ein.size + w_eout.size + w_ia.size + w_ib.size + w_hh_s.size)
        + 4 * (b_ein.size + b_eout.size + b_r.size + b_z.size
               + b_in.size + b_hn.size))

    # VMEM budget: tiles (double-buffered), bf16 weights, live f32 intermediates
    bytes_per_step = (
        2 * 4 * (2 * Bt * Np * Np + 2 * Bt * Np * Hp)
        + 2 * 2 * (2 * Hp * Hp + 3 * Hp * 3 * Hp)
        + 12 * 4 * Bt * Np * Hp)
    vmem_limit = max(32 * 1024 * 1024, min(64 * 1024 * 1024, 2 * bytes_per_step))

    out = pl.pallas_call(
        kernel,
        out_shape=jax.ShapeDtypeStruct((Bp, Np, Hp), jnp.float32),
        grid_spec=pltpu.PrefetchScalarGridSpec(
            num_scalar_prefetch=0,
            grid=(Bp // Bt,),
            in_specs=[
                pl.BlockSpec((Bt, Np, Np), lambda b: (b, 0, 0)),   # A_in
                pl.BlockSpec((Bt, Np, Np), lambda b: (b, 0, 0)),   # A_out
                pl.BlockSpec((Bt, Np, Hp), lambda b: (b, 0, 0)),   # hidden
                wspec((Hp, Hp)), wspec((Hp, Hp)),                  # edge_in/out W
                wspec((Hp, 3 * Hp)), wspec((Hp, 3 * Hp)),          # w_ih halves
                wspec((Hp, 3 * Hp)),                               # w_hh
                wspec((1, Hp)), wspec((1, Hp)),                    # edge biases
                wspec((1, Hp)), wspec((1, Hp)),                    # b_r, b_z
                wspec((1, Hp)), wspec((1, Hp)),                    # b_in, b_hn
            ],
            out_specs=pl.BlockSpec((Bt, Np, Hp), lambda b: (b, 0, 0)),
        ),
        compiler_params=pltpu.CompilerParams(
            dimension_semantics=("parallel",),
            vmem_limit_bytes=int(vmem_limit)),
        cost_estimate=pl.CostEstimate(
            flops=flops, transcendentals=transcendentals,
            bytes_accessed=bytes_accessed),
    )(
        A_in, A_out, hidden_p,
        w_ein, w_eout, w_ia, w_ib, w_hh_s,
        b_ein, b_eout, b_r, b_z, b_in, b_hn,
    )

    # padded batch rows / node rows / hidden columns sliced off here
    return out[:B, :N, :H]


def gnn_reference(A, hidden, params, *, step=1):
    """Pure-JAX reference mirroring the PyTorch GNNCell (f32 throughout)."""
    N = A.shape[1]
    for _ in range(step):
        edge_in = hidden @ params["w_edge_in"].T + params["b_edge_in"]
        edge_out = hidden @ params["w_edge_out"].T + params["b_edge_out"]
        input_in = jnp.matmul(A[:, :, :N], edge_in) + params["b_iah"]
        input_out = jnp.matmul(A[:, :, N:2 * N], edge_out) + params["b_oah"]
        inputs = jnp.concatenate([input_in, input_out], axis=2)
        gi = inputs @ params["w_ih"].T + params["b_ih"]
        gh = hidden @ params["w_hh"].T + params["b_hh"]
        i_r, i_i, i_n = jnp.split(gi, 3, axis=2)
        h_r, h_i, h_n = jnp.split(gh, 3, axis=2)
        r = jax.nn.sigmoid(i_r + h_r)
        z = jax.nn.sigmoid(i_i + h_i)
        n = jnp.tanh(i_n + r * h_n)
        hidden = n + z * (hidden - n)
    return hidden


def init_params(key, hidden_size):
    H = hidden_size
    ks = jax.random.split(key, 10)
    scale = 1.0 / jnp.sqrt(H)
    u = lambda k, shp: jax.random.uniform(k, shp, jnp.float32, -scale, scale)
    return {
        "w_ih": u(ks[0], (3 * H, 2 * H)),
        "w_hh": u(ks[1], (3 * H, H)),
        "b_ih": u(ks[2], (3 * H,)),
        "b_hh": u(ks[3], (3 * H,)),
        "b_iah": u(ks[4], (H,)),
        "b_oah": u(ks[5], (H,)),
        "w_edge_in": u(ks[6], (H, H)),
        "b_edge_in": u(ks[7], (H,)),
        "w_edge_out": u(ks[8], (H, H)),
        "b_edge_out": u(ks[9], (H,)),
        # NOTE: linear_edge_f exists in __init__ but is unused in forward().
    }


if __name__ == "__main__":
    B, N, H = 2, 8, 32
    STEP = 1

    key = jax.random.PRNGKey(0)
    k_a, k_h, k_p = jax.random.split(key, 3)

    A = jax.random.uniform(k_a, (B, N, 2 * N), jnp.float32)
    hidden = jax.random.normal(k_h, (B, N, H), jnp.float32)
    params = init_params(k_p, H)

    out = gnn_forward(A, hidden, params, step=STEP)
    out = jax.block_until_ready(out)

    ref = gnn_reference(A, hidden, params, step=STEP)
    assert out.shape == ref.shape
    # bf16 MXU operands (f32 accumulation) -> relaxed tolerance vs pure-f32 ref.
    max_err = float(jnp.max(jnp.abs(out - ref)))
    assert jnp.allclose(out, ref, atol=5e-2, rtol=5e-2), (
        "mismatch vs reference; max abs err = %g" % max_err)

    print("KERNEL_OK")
</pallas_src>

<mosaic_0001>
module attributes {stable_mosaic.version = 11 : i64} {
  func.func @_gnn_kernel(%arg0: i32, %arg1: memref<1x8x8xf32, #tpu.memory_space<vmem>>, %arg2: memref<1x8x8xf32, #tpu.memory_space<vmem>>, %arg3: memref<1x8x128xf32, #tpu.memory_space<vmem>>, %arg4: memref<128x128xbf16, #tpu.memory_space<vmem>>, %arg5: memref<128x128xbf16, #tpu.memory_space<vmem>>, %arg6: memref<128x384xbf16, #tpu.memory_space<vmem>>, %arg7: memref<128x384xbf16, #tpu.memory_space<vmem>>, %arg8: memref<128x384xbf16, #tpu.memory_space<vmem>>, %arg9: memref<1x128xf32, #tpu.memory_space<vmem>>, %arg10: memref<1x128xf32, #tpu.memory_space<vmem>>, %arg11: memref<1x128xf32, #tpu.memory_space<vmem>>, %arg12: memref<1x128xf32, #tpu.memory_space<vmem>>, %arg13: memref<1x128xf32, #tpu.memory_space<vmem>>, %arg14: memref<1x128xf32, #tpu.memory_space<vmem>>, %arg15: memref<1x8x128xf32, #tpu.memory_space<vmem>>) attributes {dimension_semantics = [#tpu.dimension_semantics<parallel>], iteration_bounds = array<i64: 2>, scalar_prefetch = 0 : i64, scratch_operands = 0 : i64, tpu.core_type = #tpu.core_type<tc>, window_params = [{transform_indices = @transform_0, window_bounds = array<i64: 1, 8, 8>}, {transform_indices = @transform_1, window_bounds = array<i64: 1, 8, 8>}, {transform_indices = @transform_2, window_bounds = array<i64: 1, 8, 128>}, {pipeline_mode = #tpu.pipeline_mode<synchronous>, transform_indices = @transform_3, window_bounds = array<i64: 128, 128>}, {pipeline_mode = #tpu.pipeline_mode<synchronous>, transform_indices = @transform_4, window_bounds = array<i64: 128, 128>}, {pipeline_mode = #tpu.pipeline_mode<synchronous>, transform_indices = @transform_5, window_bounds = array<i64: 128, 384>}, {pipeline_mode = #tpu.pipeline_mode<synchronous>, transform_indices = @transform_6, window_bounds = array<i64: 128, 384>}, {pipeline_mode = #tpu.pipeline_mode<synchronous>, transform_indices = @transform_7, window_bounds = array<i64: 128, 384>}, {pipeline_mode = #tpu.pipeline_mode<synchronous>, transform_indices = @transform_8, window_bounds = array<i64: 1, 128>}, {pipeline_mode = #tpu.pipeline_mode<synchronous>, transform_indices = @transform_9, window_bounds = array<i64: 1, 128>}, {pipeline_mode = #tpu.pipeline_mode<synchronous>, transform_indices = @transform_10, window_bounds = array<i64: 1, 128>}, {pipeline_mode = #tpu.pipeline_mode<synchronous>, transform_indices = @transform_11, window_bounds = array<i64: 1, 128>}, {pipeline_mode = #tpu.pipeline_mode<synchronous>, transform_indices = @transform_12, window_bounds = array<i64: 1, 128>}, {pipeline_mode = #tpu.pipeline_mode<synchronous>, transform_indices = @transform_13, window_bounds = array<i64: 1, 128>}, {transform_indices = @transform_14, window_bounds = array<i64: 1, 8, 128>}]} {
    %c0 = arith.constant 0 : index
    %c0_0 = arith.constant 0 : index
    %0 = vector.load %arg4[%c0, %c0_0] : memref<128x128xbf16, #tpu.memory_space<vmem>>, vector<128x128xbf16>
    %c0_1 = arith.constant 0 : index
    %c0_2 = arith.constant 0 : index
    %1 = vector.load %arg5[%c0_1, %c0_2] : memref<128x128xbf16, #tpu.memory_space<vmem>>, vector<128x128xbf16>
    %c0_3 = arith.constant 0 : index
    %c0_4 = arith.constant 0 : index
    %2 = vector.load %arg6[%c0_3, %c0_4] : memref<128x384xbf16, #tpu.memory_space<vmem>>, vector<128x384xbf16>
    %c0_5 = arith.constant 0 : index
    %c0_6 = arith.constant 0 : index
    %3 = vector.load %arg7[%c0_5, %c0_6] : memref<128x384xbf16, #tpu.memory_space<vmem>>, vector<128x384xbf16>
    %c0_7 = arith.constant 0 : index
    %c0_8 = arith.constant 0 : index
    %4 = vector.load %arg8[%c0_7, %c0_8] : memref<128x384xbf16, #tpu.memory_space<vmem>>, vector<128x384xbf16>
    %5 = vector.extract_strided_slice %2 {offsets = [0, 0], sizes = [128, 128], strides = [1, 1]} : vector<128x384xbf16> to vector<128x128xbf16>
    %6 = vector.extract_strided_slice %2 {offsets = [0, 128], sizes = [128, 128], strides = [1, 1]} : vector<128x384xbf16> to vector<128x128xbf16>
    %7 = vector.extract_strided_slice %2 {offsets = [0, 256], sizes = [128, 128], strides = [1, 1]} : vector<128x384xbf16> to vector<128x128xbf16>
    %8 = vector.extract_strided_slice %3 {offsets = [0, 0], sizes = [128, 128], strides = [1, 1]} : vector<128x384xbf16> to vector<128x128xbf16>
    %9 = vector.extract_strided_slice %3 {offsets = [0, 128], sizes = [128, 128], strides = [1, 1]} : vector<128x384xbf16> to vector<128x128xbf16>
    %10 = vector.extract_strided_slice %3 {offsets = [0, 256], sizes = [128, 128], strides = [1, 1]} : vector<128x384xbf16> to vector<128x128xbf16>
    %11 = vector.extract_strided_slice %4 {offsets = [0, 0], sizes = [128, 128], strides = [1, 1]} : vector<128x384xbf16> to vector<128x128xbf16>
    %12 = vector.extract_strided_slice %4 {offsets = [0, 128], sizes = [128, 128], strides = [1, 1]} : vector<128x384xbf16> to vector<128x128xbf16>
    %13 = vector.extract_strided_slice %4 {offsets = [0, 256], sizes = [128, 128], strides = [1, 1]} : vector<128x384xbf16> to vector<128x128xbf16>
    %c0_9 = arith.constant 0 : index
    %c0_10 = arith.constant 0 : index
    %14 = vector.load %arg9[%c0_9, %c0_10] : memref<1x128xf32, #tpu.memory_space<vmem>>, vector<1x128xf32>
    %c0_11 = arith.constant 0 : index
    %c0_12 = arith.constant 0 : index
    %15 = vector.load %arg10[%c0_11, %c0_12] : memref<1x128xf32, #tpu.memory_space<vmem>>, vector<1x128xf32>
    %c0_13 = arith.constant 0 : index
    %c0_14 = arith.constant 0 : index
    %16 = vector.load %arg11[%c0_13, %c0_14] : memref<1x128xf32, #tpu.memory_space<vmem>>, vector<1x128xf32>
    %c0_15 = arith.constant 0 : index
    %c0_16 = arith.constant 0 : index
    %17 = vector.load %arg12[%c0_15, %c0_16] : memref<1x128xf32, #tpu.memory_space<vmem>>, vector<1x128xf32>
    %c0_17 = arith.constant 0 : index
    %c0_18 = arith.constant 0 : index
    %18 = vector.load %arg13[%c0_17, %c0_18] : memref<1x128xf32, #tpu.memory_space<vmem>>, vector<1x128xf32>
    %c0_19 = arith.constant 0 : index
    %c0_20 = arith.constant 0 : index
    %19 = vector.load %arg14[%c0_19, %c0_20] : memref<1x128xf32, #tpu.memory_space<vmem>>, vector<1x128xf32>
    %c0_21 = arith.constant 0 : index
    %c0_22 = arith.constant 0 : index
    %c0_23 = arith.constant 0 : index
    %20 = vector.load %arg1[%c0_21, %c0_22, %c0_23] : memref<1x8x8xf32, #tpu.memory_space<vmem>>, vector<1x8x8xf32>
    %c0_24 = arith.constant 0 : index
    %c0_25 = arith.constant 0 : index
    %c0_26 = arith.constant 0 : index
    %21 = vector.load %arg2[%c0_24, %c0_25, %c0_26] : memref<1x8x8xf32, #tpu.memory_space<vmem>>, vector<1x8x8xf32>
    %c0_27 = arith.constant 0 : index
    %c0_28 = arith.constant 0 : index
    %c0_29 = arith.constant 0 : index
    %22 = vector.load %arg3[%c0_27, %c0_28, %c0_29] : memref<1x8x128xf32, #tpu.memory_space<vmem>>, vector<1x8x128xf32>
    %23 = vector.shape_cast %22 : vector<1x8x128xf32> to vector<8x128xf32>
    %24 = arith.truncf %23 : vector<8x128xf32> to vector<8x128xbf16>
    %cst = arith.constant dense<0.000000e+00> : vector<8x128xf32>
    %25 = tpu.matmul %24, %0, %cst {dimension_numbers = #tpu.dot_dimension_numbers<[1], [0], [0], [1], [0, 0, 1, 1], [], []>} : vector<8x128xbf16>, vector<128x128xbf16>, vector<8x128xf32> -> vector<8x128xf32>
    %26 = vector.broadcast %14 : vector<1x128xf32> to vector<8x128xf32>
    %27 = arith.addf %25, %26 : vector<8x128xf32>
    %cst_30 = arith.constant dense<0.000000e+00> : vector<8x128xf32>
    %28 = tpu.matmul %24, %1, %cst_30 {dimension_numbers = #tpu.dot_dimension_numbers<[1], [0], [0], [1], [0, 0, 1, 1], [], []>} : vector<8x128xbf16>, vector<128x128xbf16>, vector<8x128xf32> -> vector<8x128xf32>
    %29 = vector.broadcast %15 : vector<1x128xf32> to vector<8x128xf32>
    %30 = arith.addf %28, %29 : vector<8x128xf32>
    %31 = vector.shape_cast %27 : vector<8x128xf32> to vector<1x8x128xf32>
    "tpu.trace_start"() <{level = 10 : i32, message = "bmn,bnh->bmh"}> : () -> ()
    %cst_31 = arith.constant dense<0.000000e+00> : vector<1x8x128xf32>
    %32 = tpu.matmul %20, %31, %cst_31 {dimension_numbers = #tpu.dot_dimension_numbers<[2], [1], [1], [2], [0, 0, 0, 1, 1, 2], [0], [0]>} : vector<1x8x8xf32>, vector<1x8x128xf32>, vector<1x8x128xf32> -> vector<1x8x128xf32>
    "tpu.trace_stop"() : () -> ()
    %33 = vector.shape_cast %32 : vector<1x8x128xf32> to vector<8x128xf32>
    %34 = vector.shape_cast %30 : vector<8x128xf32> to vector<1x8x128xf32>
    "tpu.trace_start"() <{level = 10 : i32, message = "bmn,bnh->bmh"}> : () -> ()
    %cst_32 = arith.constant dense<0.000000e+00> : vector<1x8x128xf32>
    %35 = tpu.matmul %21, %34, %cst_32 {dimension_numbers = #tpu.dot_dimension_numbers<[2], [1], [1], [2], [0, 0, 0, 1, 1, 2], [0], [0]>} : vector<1x8x8xf32>, vector<1x8x128xf32>, vector<1x8x128xf32> -> vector<1x8x128xf32>
    "tpu.trace_stop"() : () -> ()
    %36 = vector.shape_cast %35 : vector<1x8x128xf32> to vector<8x128xf32>
    %37 = arith.truncf %33 : vector<8x128xf32> to vector<8x128xbf16>
    %38 = arith.truncf %36 : vector<8x128xf32> to vector<8x128xbf16>
    %cst_33 = arith.constant dense<0.000000e+00> : vector<8x128xf32>
    %39 = tpu.matmul %37, %5, %cst_33 {dimension_numbers = #tpu.dot_dimension_numbers<[1], [0], [0], [1], [0, 0, 1, 1], [], []>} : vector<8x128xbf16>, vector<128x128xbf16>, vector<8x128xf32> -> vector<8x128xf32>
    %cst_34 = arith.constant dense<0.000000e+00> : vector<8x128xf32>
    %40 = tpu.matmul %38, %8, %cst_34 {dimension_numbers = #tpu.dot_dimension_numbers<[1], [0], [0], [1], [0, 0, 1, 1], [], []>} : vector<8x128xbf16>, vector<128x128xbf16>, vector<8x128xf32> -> vector<8x128xf32>
    %41 = arith.addf %39, %40 : vector<8x128xf32>
    %cst_35 = arith.constant dense<0.000000e+00> : vector<8x128xf32>
    %42 = tpu.matmul %24, %11, %cst_35 {dimension_numbers = #tpu.dot_dimension_numbers<[1], [0], [0], [1], [0, 0, 1, 1], [], []>} : vector<8x128xbf16>, vector<128x128xbf16>, vector<8x128xf32> -> vector<8x128xf32>
    %43 = arith.addf %41, %42 : vector<8x128xf32>
    %44 = vector.broadcast %16 : vector<1x128xf32> to vector<8x128xf32>
    %45 = arith.addf %43, %44 : vector<8x128xf32>
    %46 = arith.negf %45 : vector<8x128xf32>
    %47 = math.exp %46 : vector<8x128xf32>
    %cst_36 = arith.constant 1.000000e+00 : f32
    %48 = vector.broadcast %cst_36 : f32 to vector<8x128xf32>
    %49 = arith.addf %48, %47 : vector<8x128xf32>
    %50 = arith.divf %48, %49 : vector<8x128xf32>
    %cst_37 = arith.constant dense<0.000000e+00> : vector<8x128xf32>
    %51 = tpu.matmul %37, %6, %cst_37 {dimension_numbers = #tpu.dot_dimension_numbers<[1], [0], [0], [1], [0, 0, 1, 1], [], []>} : vector<8x128xbf16>, vector<128x128xbf16>, vector<8x128xf32> -> vector<8x128xf32>
    %cst_38 = arith.constant dense<0.000000e+00> : vector<8x128xf32>
    %52 = tpu.matmul %38, %9, %cst_38 {dimension_numbers = #tpu.dot_dimension_numbers<[1], [0], [0], [1], [0, 0, 1, 1], [], []>} : vector<8x128xbf16>, vector<128x128xbf16>, vector<8x128xf32> -> vector<8x128xf32>
    %53 = arith.addf %51, %52 : vector<8x128xf32>
    %cst_39 = arith.constant dense<0.000000e+00> : vector<8x128xf32>
    %54 = tpu.matmul %24, %12, %cst_39 {dimension_numbers = #tpu.dot_dimension_numbers<[1], [0], [0], [1], [0, 0, 1, 1], [], []>} : vector<8x128xbf16>, vector<128x128xbf16>, vector<8x128xf32> -> vector<8x128xf32>
    %55 = arith.addf %53, %54 : vector<8x128xf32>
    %56 = vector.broadcast %17 : vector<1x128xf32> to vector<8x128xf32>
    %57 = arith.addf %55, %56 : vector<8x128xf32>
    %58 = arith.negf %57 : vector<8x128xf32>
    %59 = math.exp %58 : vector<8x128xf32>
    %cst_40 = arith.constant 1.000000e+00 : f32
    %60 = vector.broadcast %cst_40 : f32 to vector<8x128xf32>
    %61 = arith.addf %60, %59 : vector<8x128xf32>
    %62 = arith.divf %60, %61 : vector<8x128xf32>
    %cst_41 = arith.constant dense<0.000000e+00> : vector<8x128xf32>
    %63 = tpu.matmul %37, %7, %cst_41 {dimension_numbers = #tpu.dot_dimension_numbers<[1], [0], [0], [1], [0, 0, 1, 1], [], []>} : vector<8x128xbf16>, vector<128x128xbf16>, vector<8x128xf32> -> vector<8x128xf32>
    %cst_42 = arith.constant dense<0.000000e+00> : vector<8x128xf32>
    %64 = tpu.matmul %38, %10, %cst_42 {dimension_numbers = #tpu.dot_dimension_numbers<[1], [0], [0], [1], [0, 0, 1, 1], [], []>} : vector<8x128xbf16>, vector<128x128xbf16>, vector<8x128xf32> -> vector<8x128xf32>
    %65 = arith.addf %63, %64 : vector<8x128xf32>
    %66 = vector.broadcast %18 : vector<1x128xf32> to vector<8x128xf32>
    %67 = arith.addf %65, %66 : vector<8x128xf32>
    %cst_43 = arith.constant dense<0.000000e+00> : vector<8x128xf32>
    %68 = tpu.matmul %24, %13, %cst_43 {dimension_numbers = #tpu.dot_dimension_numbers<[1], [0], [0], [1], [0, 0, 1, 1], [], []>} : vector<8x128xbf16>, vector<128x128xbf16>, vector<8x128xf32> -> vector<8x128xf32>
    %69 = vector.broadcast %19 : vector<1x128xf32> to vector<8x128xf32>
    %70 = arith.addf %68, %69 : vector<8x128xf32>
    %71 = arith.mulf %50, %70 : vector<8x128xf32>
    %72 = arith.addf %67, %71 : vector<8x128xf32>
    %73 = math.tanh %72 : vector<8x128xf32>
    %74 = arith.subf %23, %73 : vector<8x128xf32>
    %75 = arith.mulf %62, %74 : vector<8x128xf32>
    %76 = arith.addf %73, %75 : vector<8x128xf32>
    %77 = vector.shape_cast %76 : vector<8x128xf32> to vector<1x8x128xf32>
    %c0_44 = arith.constant 0 : index
    %c0_45 = arith.constant 0 : index
    %c0_46 = arith.constant 0 : index
    %78 = vector.load %arg15[%c0_44, %c0_45, %c0_46] : memref<1x8x128xf32, #tpu.memory_space<vmem>>, vector<1x8x128xf32>
    tpu.vector_store %arg15[%c0_44, %c0_45, %c0_46], %77 {strides = array<i32>} : memref<1x8x128xf32, #tpu.memory_space<vmem>>, vector<1x8x128xf32>,
    return
  }
  func.func @transform_0(%arg0: i32) -> (i32, i32, i32) {
    %c0_i32 = arith.constant 0 : i32
    %c0_i32_0 = arith.constant 0 : i32
    %c0_i32_1 = arith.constant 0 : i32
    return %arg0, %c0_i32, %c0_i32_0 : i32, i32, i32
  }
  func.func @transform_1(%arg0: i32) -> (i32, i32, i32) {
    %c0_i32 = arith.constant 0 : i32
    %c0_i32_0 = arith.constant 0 : i32
    %c0_i32_1 = arith.constant 0 : i32
    return %arg0, %c0_i32, %c0_i32_0 : i32, i32, i32
  }
  func.func @transform_2(%arg0: i32) -> (i32, i32, i32) {
    %c0_i32 = arith.constant 0 : i32
    %c0_i32_0 = arith.constant 0 : i32
    %c0_i32_1 = arith.constant 0 : i32
    return %arg0, %c0_i32, %c0_i32_0 : i32, i32, i32
  }
  func.func @transform_3(%arg0: i32) -> (i32, i32) {
    %c0_i32 = arith.constant 0 : i32
    %c0_i32_0 = arith.constant 0 : i32
    %c0_i32_1 = arith.constant 0 : i32
    return %c0_i32, %c0_i32_0 : i32, i32
  }
  func.func @transform_4(%arg0: i32) -> (i32, i32) {
    %c0_i32 = arith.constant 0 : i32
    %c0_i32_0 = arith.constant 0 : i32
    %c0_i32_1 = arith.constant 0 : i32
    return %c0_i32, %c0_i32_0 : i32, i32
  }
  func.func @transform_5(%arg0: i32) -> (i32, i32) {
    %c0_i32 = arith.constant 0 : i32
    %c0_i32_0 = arith.constant 0 : i32
    %c0_i32_1 = arith.constant 0 : i32
    return %c0_i32, %c0_i32_0 : i32, i32
  }
  func.func @transform_6(%arg0: i32) -> (i32, i32) {
    %c0_i32 = arith.constant 0 : i32
    %c0_i32_0 = arith.constant 0 : i32
    %c0_i32_1 = arith.constant 0 : i32
    return %c0_i32, %c0_i32_0 : i32, i32
  }
  func.func @transform_7(%arg0: i32) -> (i32, i32) {
    %c0_i32 = arith.constant 0 : i32
    %c0_i32_0 = arith.constant 0 : i32
    %c0_i32_1 = arith.constant 0 : i32
    return %c0_i32, %c0_i32_0 : i32, i32
  }
  func.func @transform_8(%arg0: i32) -> (i32, i32) {
    %c0_i32 = arith.constant 0 : i32
    %c0_i32_0 = arith.constant 0 : i32
    %c0_i32_1 = arith.constant 0 : i32
    return %c0_i32, %c0_i32_0 : i32, i32
  }
  func.func @transform_9(%arg0: i32) -> (i32, i32) {
    %c0_i32 = arith.constant 0 : i32
    %c0_i32_0 = arith.constant 0 : i32
    %c0_i32_1 = arith.constant 0 : i32
    return %c0_i32, %c0_i32_0 : i32, i32
  }
  func.func @transform_10(%arg0: i32) -> (i32, i32) {
    %c0_i32 = arith.constant 0 : i32
    %c0_i32_0 = arith.constant 0 : i32
    %c0_i32_1 = arith.constant 0 : i32
    return %c0_i32, %c0_i32_0 : i32, i32
  }
  func.func @transform_11(%arg0: i32) -> (i32, i32) {
    %c0_i32 = arith.constant 0 : i32
    %c0_i32_0 = arith.constant 0 : i32
    %c0_i32_1 = arith.constant 0 : i32
    return %c0_i32, %c0_i32_0 : i32, i32
  }
  func.func @transform_12(%arg0: i32) -> (i32, i32) {
    %c0_i32 = arith.constant 0 : i32
    %c0_i32_0 = arith.constant 0 : i32
    %c0_i32_1 = arith.constant 0 : i32
    return %c0_i32, %c0_i32_0 : i32, i32
  }
  func.func @transform_13(%arg0: i32) -> (i32, i32) {
    %c0_i32 = arith.constant 0 : i32
    %c0_i32_0 = arith.constant 0 : i32
    %c0_i32_1 = arith.constant 0 : i32
    return %c0_i32, %c0_i32_0 : i32, i32
  }
  func.func @transform_14(%arg0: i32) -> (i32, i32, i32) {
    %c0_i32 = arith.constant 0 : i32
    %c0_i32_0 = arith.constant 0 : i32
    %c0_i32_1 = arith.constant 0 : i32
    return %arg0, %c0_i32, %c0_i32_0 : i32, i32, i32
  }
}

</mosaic_0001>

<llo_original>
// kernel: tpu_custom_call.1
$region0: #{tpu_custom_call.1}
  #allocation0 [shape = 'u32[]', space=smem, size = 0x4, offset = 0x4, fixed_abs, tag = 'smem constant byte address 0x4 - core index']
  #allocation1 [shape = 'u32[144,128]{1,0:T(1,128)}', space=vmem, size = 0x12000, scoped, tag = 'internal scratch']
  %s0 = inlined_call_operand.hbm [shape: f32[2,8,8], index: 0, kind: input, shape index: {}]
  %s1 = inlined_call_operand.hbm [shape: f32[2,8,8], index: 1, kind: input, shape index: {}]
  %s2 = inlined_call_operand.hbm [shape: f32[2,8,128], index: 2, kind: input, shape index: {}]
  %s3 = inlined_call_operand.hbm [shape: bf16[128,128], index: 3, kind: input, shape index: {}]
  %s4 = inlined_call_operand.hbm [shape: bf16[128,128], index: 4, kind: input, shape index: {}]
  %s5 = inlined_call_operand.hbm [shape: bf16[128,384], index: 5, kind: input, shape index: {}]
  %s6 = inlined_call_operand.hbm [shape: bf16[128,384], index: 6, kind: input, shape index: {}]
  %s7 = inlined_call_operand.hbm [shape: bf16[128,384], index: 7, kind: input, shape index: {}]
  %s8 = inlined_call_operand.vmem [shape: f32[1,128], index: 8, kind: input, shape index: {}]
  %s9 = inlined_call_operand.vmem [shape: f32[1,128], index: 9, kind: input, shape index: {}]
  %s10 = inlined_call_operand.vmem [shape: f32[1,128], index: 10, kind: input, shape index: {}]
  %s11 = inlined_call_operand.vmem [shape: f32[1,128], index: 11, kind: input, shape index: {}]
  %s12 = inlined_call_operand.vmem [shape: f32[1,128], index: 12, kind: input, shape index: {}]
  %s13 = inlined_call_operand.vmem [shape: f32[1,128], index: 13, kind: input, shape index: {}]
  %s14 = inlined_call_operand.hbm [shape: f32[2,8,128], index: 14, kind: output, shape index: {}]
  %s15 = sld [smem:[#allocation0]]
  $region121: #{tpu_custom_call.1} parent=0
    _
  %s17 = ssub.s32 1, %s15
  %s18 = scalar_select 0, %s17, %s15
  $region1: #{tpu_custom_call.1} parent=0
    #allocation2 [shape = 'u8[8192]{0}', space=vmem, size = 0x2000, scoped, tag = 'input window, operand 0']
    #allocation3 [shape = 's32[2]{0}', space=sflag, size = 0x8, scoped, tag = 'scoped memory for tpu_custom_call.1']
    #allocation4 [shape = 's32[2]{0}', space=sflag, size = 0x8, scoped, tag = 'scoped memory for tpu_custom_call.1']
    #allocation5 [shape = 'u8[8192]{0}', space=vmem, size = 0x2000, scoped, tag = 'input window, operand 1']
    #allocation6 [shape = 's32[2]{0}', space=sflag, size = 0x8, scoped, tag = 'scoped memory for tpu_custom_call.1']
    #allocation7 [shape = 'u8[8192]{0}', space=vmem, size = 0x2000, scoped, tag = 'input window, operand 2']
    #allocation8 [shape = 'u8[32768]{0}', space=vmem, size = 0x8000, scoped, tag = 'input window, operand 3, single buffered']
    #allocation9 [shape = 's32[1]{0}', space=sflag, size = 0x4, scoped, tag = 'scoped memory for tpu_custom_call.1']
    #allocation10 [shape = 'u8[32768]{0}', space=vmem, size = 0x8000, scoped, tag = 'input window, operand 4, single buffered']
    #allocation11 [shape = 'u8[98304]{0}', space=vmem, size = 0x18000, scoped, tag = 'input window, operand 5, single buffered']
    #allocation12 [shape = 's32[1]{0}', space=sflag, size = 0x4, scoped, tag = 'scoped memory for tpu_custom_call.1']
    #allocation13 [shape = 'u8[98304]{0}', space=vmem, size = 0x18000, scoped, tag = 'input window, operand 6, single buffered']
    #allocation14 [shape = 'u8[98304]{0}', space=vmem, size = 0x18000, scoped, tag = 'input window, operand 7, single buffered']
    #allocation15 [shape = 's32[1]{0}', space=sflag, size = 0x4, scoped, tag = 'scoped memory for tpu_custom_call.1']
    #allocation16 [shape = 'u8[8192]{0}', space=vmem, size = 0x2000, scoped, tag = 'output window, operand 0']
    %19 = vsyncpa [#allocation3], 0
    %s20 = scalar_lea.sflag [#allocation3], 1
    %21 = vsyncpa %s20, 0
    %22 = vsyncpa [#allocation6], 0
    %s23 = scalar_lea.sflag [#allocation6], 1
    %24 = vsyncpa %s23, 0
    %25 = vsyncpa [#allocation9], 0
    %26 = vsyncpa [#allocation12], 0
    %27 = vsyncpa [#allocation15], 0
    %28 = vsyncpa [#allocation4], 0
    %s29 = scalar_lea.sflag [#allocation4], 1
    %30 = vsyncpa %s29, 0
    loop: start=0, step=1, limit=4
    $region2: #{tpu_custom_call.1} parent=1 // loop_pre_header
      _
    $region3: #{tpu_custom_call.1} parent=1 // loop_header
      %s32 = sphi 0, %s36
      %p33 = scmp.ge.s32.totalorder %s32, 4
      %s42 = sphi 0, %s44
      %s45 = sphi 0, %s42
      %s46 = sphi 0, %s45
      %s62 = sphi 0, %s46
      %s68 = sphi 0, %s70
      %s71 = sphi 0, %s68
      %s72 = sphi 0, %s71
      %s88 = sphi 0, %s72
      %s94 = sphi 0, %s96
      %s97 = sphi 0, %s94
      %s98 = sphi 0, %s97
      %s114 = sphi 0, %s98
      %s118 = sphi 0, %s118
      %s120 = sphi 0, %s118
      %s121 = sphi 0, %s120
      %s135 = sphi 0, %s121
      %s139 = sphi 0, %s139
      %s141 = sphi 0, %s139
      %s142 = sphi 0, %s141
      %s156 = sphi 0, %s142
      %s160 = sphi 0, %s160
      %s162 = sphi 0, %s160
      %s163 = sphi 0, %s162
      %s177 = sphi 0, %s163
      %s181 = sphi 0, %s181
      %s183 = sphi 0, %s181
      %s184 = sphi 0, %s183
      %s198 = sphi 0, %s184
      %s202 = sphi 0, %s202
      %s204 = sphi 0, %s202
      %s205 = sphi 0, %s204
      %s219 = sphi 0, %s205
      %s223 = sphi 0, %s223
      %s225 = sphi 0, %s223
      %s226 = sphi 0, %s225
      %s240 = sphi 0, %s226
      %s244 = sphi 0, %s244
      %s246 = sphi 0, %s244
      %s247 = sphi 0, %s246
      %s261 = sphi 0, %s247
      %s265 = sphi 0, %s265
      %s267 = sphi 0, %s265
      %s268 = sphi 0, %s267
      %s282 = sphi 0, %s268
      %s286 = sphi 0, %s286
      %s288 = sphi 0, %s286
      %s289 = sphi 0, %s288
      %s303 = sphi 0, %s289
      %s307 = sphi 0, %s307
      %s309 = sphi 0, %s307
      %s310 = sphi 0, %s309
      %s324 = sphi 0, %s310
      %s328 = sphi 0, %s328
      %s330 = sphi 0, %s328
      %s331 = sphi 0, %s330
      %s345 = sphi 0, %s331
      %s351 = sphi 0, %s353
      %s354 = sphi 0, %s351
      %s355 = sphi 0, %s354
      %s371 = sphi 0, %s355
    $region4: #{tpu_custom_call.1} parent=1 // loop_header_branch
      %35 = sbr.rel (%p33) target = $region8
    $region5: #{tpu_custom_call.1} parent=1 // loop_body
      %s37 = ssub.s32 %s32, 1
      %s38 = ssub.s32 %s32, 2
      %s39 = sadd.s32 %s32, 1
      %s40 = ssub.s32 %s32, %s39
      %p41 = scmp.eq.s32.totalorder %s40, 0
      %s43 = sadd.s32 %s42, 1
      %s44 = scalar_select %p41, %s42, %s43
      %p47 = pneg %p41
      %p48 = scmp.eq.s32.totalorder %s32, 1
      %p49 = por %p47, %p48
      %p50 = scmp.ne.s32.totalorder %s42, %s45
      %p51 = scmp.eq.s32.totalorder %s32, 0
      %p52 = por %p50, %p51
      %p53 = scmp.ne.s32.totalorder %s42, %s45
      %p54 = scmp.eq.s32.totalorder %s37, 1
      %p55 = por %p53, %p54
      %p56 = scmp.ne.s32.totalorder %s45, %s46
      %p57 = scmp.eq.s32.totalorder %s37, 0
      %p58 = por %p56, %p57
      %p59 = scmp.ne.s32.totalorder %s45, %s46
      %p60 = scmp.eq.s32.totalorder %s38, 1
      %p61 = por %p59, %p60
      %p63 = scmp.ne.s32.totalorder %s46, %s62
      %p64 = scmp.eq.s32.totalorder %s38, 0
      %p65 = por %p63, %p64
      %s66 = ssub.s32 %s32, %s39
      %p67 = scmp.eq.s32.totalorder %s66, 0
      %s69 = sadd.s32 %s68, 1
      %s70 = scalar_select %p67, %s68, %s69
      %p73 = pneg %p67
      %p74 = scmp.eq.s32.totalorder %s32, 1
      %p75 = por %p73, %p74
      %p76 = scmp.ne.s32.totalorder %s68, %s71
      %p77 = scmp.eq.s32.totalorder %s32, 0
      %p78 = por %p76, %p77
      %p79 = scmp.ne.s32.totalorder %s68, %s71
      %p80 = scmp.eq.s32.totalorder %s37, 1
      %p81 = por %p79, %p80
      %p82 = scmp.ne.s32.totalorder %s71, %s72
      %p83 = scmp.eq.s32.totalorder %s37, 0
      %p84 = por %p82, %p83
      %p85 = scmp.ne.s32.totalorder %s71, %s72
      %p86 = scmp.eq.s32.totalorder %s38, 1
      %p87 = por %p85, %p86
      %p89 = scmp.ne.s32.totalorder %s72, %s88
      %p90 = scmp.eq.s32.totalorder %s38, 0
      %p91 = por %p89, %p90
      %s92 = ssub.s32 %s32, %s39
      %p93 = scmp.eq.s32.totalorder %s92, 0
      %s95 = sadd.s32 %s94, 1
      %s96 = scalar_select %p93, %s94, %s95
      %p99 = pneg %p93
      %p100 = scmp.eq.s32.totalorder %s32, 1
      %p101 = por %p99, %p100
      %p102 = scmp.ne.s32.totalorder %s94, %s97
      %p103 = scmp.eq.s32.totalorder %s32, 0
      %p104 = por %p102, %p103
      %p105 = scmp.ne.s32.totalorder %s94, %s97
      %p106 = scmp.eq.s32.totalorder %s37, 1
      %p107 = por %p105, %p106
      %p108 = scmp.ne.s32.totalorder %s97, %s98
      %p109 = scmp.eq.s32.totalorder %s37, 0
      %p110 = por %p108, %p109
      %p111 = scmp.ne.s32.totalorder %s97, %s98
      %p112 = scmp.eq.s32.totalorder %s38, 1
      %p113 = por %p111, %p112
      %p115 = scmp.ne.s32.totalorder %s98, %s114
      %p116 = scmp.eq.s32.totalorder %s38, 0
      %p117 = por %p115, %p116
      %s119 = sadd.s32 %s118, 1
      %p122 = scmp.eq.s32.totalorder %s32, 1
      %p123 = scmp.ne.s32.totalorder %s118, %s120
      %p124 = scmp.eq.s32.totalorder %s32, 0
      %p125 = por %p123, %p124
      %p126 = scmp.ne.s32.totalorder %s118, %s120
      %p127 = scmp.eq.s32.totalorder %s37, 1
      %p128 = por %p126, %p127
      %p129 = scmp.ne.s32.totalorder %s120, %s121
      %p130 = scmp.eq.s32.totalorder %s37, 0
      %p131 = por %p129, %p130
      %p132 = scmp.ne.s32.totalorder %s120, %s121
      %p133 = scmp.eq.s32.totalorder %s38, 1
      %p134 = por %p132, %p133
      %p136 = scmp.ne.s32.totalorder %s121, %s135
      %p137 = scmp.eq.s32.totalorder %s38, 0
      %p138 = por %p136, %p137
      %s140 = sadd.s32 %s139, 1
      %p143 = scmp.eq.s32.totalorder %s32, 1
      %p144 = scmp.ne.s32.totalorder %s139, %s141
      %p145 = scmp.eq.s32.totalorder %s32, 0
      %p146 = por %p144, %p145
      %p147 = scmp.ne.s32.totalorder %s139, %s141
      %p148 = scmp.eq.s32.totalorder %s37, 1
      %p149 = por %p147, %p148
      %p150 = scmp.ne.s32.totalorder %s141, %s142
      %p151 = scmp.eq.s32.totalorder %s37, 0
      %p152 = por %p150, %p151
      %p153 = scmp.ne.s32.totalorder %s141, %s142
      %p154 = scmp.eq.s32.totalorder %s38, 1
      %p155 = por %p153, %p154
      %p157 = scmp.ne.s32.totalorder %s142, %s156
      %p158 = scmp.eq.s32.totalorder %s38, 0
      %p159 = por %p157, %p158
      %s161 = sadd.s32 %s160, 1
      %p164 = scmp.eq.s32.totalorder %s32, 1
      %p165 = scmp.ne.s32.totalorder %s160, %s162
      %p166 = scmp.eq.s32.totalorder %s32, 0
      %p167 = por %p165, %p166
      %p168 = scmp.ne.s32.totalorder %s160, %s162
      %p169 = scmp.eq.s32.totalorder %s37, 1
      %p170 = por %p168, %p169
      %p171 = scmp.ne.s32.totalorder %s162, %s163
      %p172 = scmp.eq.s32.totalorder %s37, 0
      %p173 = por %p171, %p172
      %p174 = scmp.ne.s32.totalorder %s162, %s163
      %p175 = scmp.eq.s32.totalorder %s38, 1
      %p176 = por %p174, %p175
      %p178 = scmp.ne.s32.totalorder %s163, %s177
      %p179 = scmp.eq.s32.totalorder %s38, 0
      %p180 = por %p178, %p179
      %s182 = sadd.s32 %s181, 1
      %p185 = scmp.eq.s32.totalorder %s32, 1
      %p186 = scmp.ne.s32.totalorder %s181, %s183
      %p187 = scmp.eq.s32.totalorder %s32, 0
      %p188 = por %p186, %p187
      %p189 = scmp.ne.s32.totalorder %s181, %s183
      %p190 = scmp.eq.s32.totalorder %s37, 1
      %p191 = por %p189, %p190
      %p192 = scmp.ne.s32.totalorder %s183, %s184
      %p193 = scmp.eq.s32.totalorder %s37, 0
      %p194 = por %p192, %p193
      %p195 = scmp.ne.s32.totalorder %s183, %s184
      %p196 = scmp.eq.s32.totalorder %s38, 1
      %p197 = por %p195, %p196
      %p199 = scmp.ne.s32.totalorder %s184, %s198
      %p200 = scmp.eq.s32.totalorder %s38, 0
      %p201 = por %p199, %p200
      %s203 = sadd.s32 %s202, 1
      %p206 = scmp.eq.s32.totalorder %s32, 1
      %p207 = scmp.ne.s32.totalorder %s202, %s204
      %p208 = scmp.eq.s32.totalorder %s32, 0
      %p209 = por %p207, %p208
      %p210 = scmp.ne.s32.totalorder %s202, %s204
      %p211 = scmp.eq.s32.totalorder %s37, 1
      %p212 = por %p210, %p211
      %p213 = scmp.ne.s32.totalorder %s204, %s205
      %p214 = scmp.eq.s32.totalorder %s37, 0
      %p215 = por %p213, %p214
      %p216 = scmp.ne.s32.totalorder %s204, %s205
      %p217 = scmp.eq.s32.totalorder %s38, 1
      %p218 = por %p216, %p217
      %p220 = scmp.ne.s32.totalorder %s205, %s219
      %p221 = scmp.eq.s32.totalorder %s38, 0
      %p222 = por %p220, %p221
      %s224 = sadd.s32 %s223, 1
      %p227 = scmp.eq.s32.totalorder %s32, 1
      %p228 = scmp.ne.s32.totalorder %s223, %s225
      %p229 = scmp.eq.s32.totalorder %s32, 0
      %p230 = por %p228, %p229
      %p231 = scmp.ne.s32.totalorder %s223, %s225
      %p232 = scmp.eq.s32.totalorder %s37, 1
      %p233 = por %p231, %p232
      %p234 = scmp.ne.s32.totalorder %s225, %s226
      %p235 = scmp.eq.s32.totalorder %s37, 0
      %p236 = por %p234, %p235
      %p237 = scmp.ne.s32.totalorder %s225, %s226
      %p238 = scmp.eq.s32.totalorder %s38, 1
      %p239 = por %p237, %p238
      %p241 = scmp.ne.s32.totalorder %s226, %s240
      %p242 = scmp.eq.s32.totalorder %s38, 0
      %p243 = por %p241, %p242
      %s245 = sadd.s32 %s244, 1
      %p248 = scmp.eq.s32.totalorder %s32, 1
      %p249 = scmp.ne.s32.totalorder %s244, %s246
      %p250 = scmp.eq.s32.totalorder %s32, 0
      %p251 = por %p249, %p250
      %p252 = scmp.ne.s32.totalorder %s244, %s246
      %p253 = scmp.eq.s32.totalorder %s37, 1
      %p254 = por %p252, %p253
      %p255 = scmp.ne.s32.totalorder %s246, %s247
      %p256 = scmp.eq.s32.totalorder %s37, 0
      %p257 = por %p255, %p256
      %p258 = scmp.ne.s32.totalorder %s246, %s247
      %p259 = scmp.eq.s32.totalorder %s38, 1
      %p260 = por %p258, %p259
      %p262 = scmp.ne.s32.totalorder %s247, %s261
      %p263 = scmp.eq.s32.totalorder %s38, 0
      %p264 = por %p262, %p263
      %s266 = sadd.s32 %s265, 1
      %p269 = scmp.eq.s32.totalorder %s32, 1
      %p270 = scmp.ne.s32.totalorder %s265, %s267
      %p271 = scmp.eq.s32.totalorder %s32, 0
      %p272 = por %p270, %p271
      %p273 = scmp.ne.s32.totalorder %s265, %s267
      %p274 = scmp.eq.s32.totalorder %s37, 1
      %p275 = por %p273, %p274
      %p276 = scmp.ne.s32.totalorder %s267, %s268
      %p277 = scmp.eq.s32.totalorder %s37, 0
      %p278 = por %p276, %p277
      %p279 = scmp.ne.s32.totalorder %s267, %s268
      %p280 = scmp.eq.s32.totalorder %s38, 1
      %p281 = por %p279, %p280
      %p283 = scmp.ne.s32.totalorder %s268, %s282
      %p284 = scmp.eq.s32.totalorder %s38, 0
      %p285 = por %p283, %p284
      %s287 = sadd.s32 %s286, 1
      %p290 = scmp.eq.s32.totalorder %s32, 1
      %p291 = scmp.ne.s32.totalorder %s286, %s288
      %p292 = scmp.eq.s32.totalorder %s32, 0
      %p293 = por %p291, %p292
      %p294 = scmp.ne.s32.totalorder %s286, %s288
      %p295 = scmp.eq.s32.totalorder %s37, 1
      %p296 = por %p294, %p295
      %p297 = scmp.ne.s32.totalorder %s288, %s289
      %p298 = scmp.eq.s32.totalorder %s37, 0
      %p299 = por %p297, %p298
      %p300 = scmp.ne.s32.totalorder %s288, %s289
      %p301 = scmp.eq.s32.totalorder %s38, 1
      %p302 = por %p300, %p301
      %p304 = scmp.ne.s32.totalorder %s289, %s303
      %p305 = scmp.eq.s32.totalorder %s38, 0
      %p306 = por %p304, %p305
      %s308 = sadd.s32 %s307, 1
      %p311 = scmp.eq.s32.totalorder %s32, 1
      %p312 = scmp.ne.s32.totalorder %s307, %s309
      %p313 = scmp.eq.s32.totalorder %s32, 0
      %p314 = por %p312, %p313
      %p315 = scmp.ne.s32.totalorder %s307, %s309
      %p316 = scmp.eq.s32.totalorder %s37, 1
      %p317 = por %p315, %p316
      %p318 = scmp.ne.s32.totalorder %s309, %s310
      %p319 = scmp.eq.s32.totalorder %s37, 0
      %p320 = por %p318, %p319
      %p321 = scmp.ne.s32.totalorder %s309, %s310
      %p322 = scmp.eq.s32.totalorder %s38, 1
      %p323 = por %p321, %p322
      %p325 = scmp.ne.s32.totalorder %s310, %s324
      %p326 = scmp.eq.s32.totalorder %s38, 0
      %p327 = por %p325, %p326
      %s329 = sadd.s32 %s328, 1
      %p332 = scmp.eq.s32.totalorder %s32, 1
      %p333 = scmp.ne.s32.totalorder %s328, %s330
      %p334 = scmp.eq.s32.totalorder %s32, 0
      %p335 = por %p333, %p334
      %p336 = scmp.ne.s32.totalorder %s328, %s330
      %p337 = scmp.eq.s32.totalorder %s37, 1
      %p338 = por %p336, %p337
      %p339 = scmp.ne.s32.totalorder %s330, %s331
      %p340 = scmp.eq.s32.totalorder %s37, 0
      %p341 = por %p339, %p340
      %p342 = scmp.ne.s32.totalorder %s330, %s331
      %p343 = scmp.eq.s32.totalorder %s38, 1
      %p344 = por %p342, %p343
      %p346 = scmp.ne.s32.totalorder %s331, %s345
      %p347 = scmp.eq.s32.totalorder %s38, 0
      %p348 = por %p346, %p347
      %s349 = ssub.s32 %s32, %s39
      %p350 = scmp.eq.s32.totalorder %s349, 0
      %s352 = sadd.s32 %s351, 1
      %s353 = scalar_select %p350, %s351, %s352
      %p356 = pneg %p350
      %p357 = scmp.eq.s32.totalorder %s32, 1
      %p358 = por %p356, %p357
      %p359 = scmp.ne.s32.totalorder %s351, %s354
      %p360 = scmp.eq.s32.totalorder %s32, 0
      %p361 = por %p359, %p360
      %p362 = scmp.ne.s32.totalorder %s351, %s354
      %p363 = scmp.eq.s32.totalorder %s37, 1
      %p364 = por %p362, %p363
      %p365 = scmp.ne.s32.totalorder %s354, %s355
      %p366 = scmp.eq.s32.totalorder %s37, 0
      %p367 = por %p365, %p366
      %p368 = scmp.ne.s32.totalorder %s354, %s355
      %p369 = scmp.eq.s32.totalorder %s38, 1
      %p370 = por %p368, %p369
      %p372 = scmp.ne.s32.totalorder %s355, %s371
      %p373 = scmp.eq.s32.totalorder %s38, 0
      %p374 = por %p372, %p373
      %p375 = scmp.le.s32.totalorder 1, %s32
      %p376 = scmp.lt.s32.totalorder %s32, 3
      %p377 = pnand %p375, %p376
      %p378 = pneg %p377
      // Predicated region
      $region9: #{tpu_custom_call.1} parent=5 // pred_check
        _
      $region10: #{tpu_custom_call.1} parent=5 // pred_check_branch
        %380 = sbr.rel (%p377) target = $region12
      $region11: #{tpu_custom_call.1} parent=5 // pred_region
        %s381 = ssub.s32 %s32, 1
        // Predicated region
        $region13: #{tpu_custom_call.1} parent=11 // pred_check
          %p382 = pneg %p131
        $region14: #{tpu_custom_call.1} parent=11 // pred_check_branch
          %384 = sbr.rel (%p382) target = $region16
        $region15: #{tpu_custom_call.1} parent=11 // pred_region
          %s386 = ssub.s32 1024, 1024
          %387 = vsyncadd [#allocation9], %s386
          %s388 = sshll.u32 [#allocation8], 4
          %s389 = int_to_ptr.vmem [resolvable:$true] %s388
          %394 = dma.hbm_to_vmem [thread:$0]  %s3, 1024, %s389, [#allocation9], 64, 64, 4
        $region16: #{tpu_custom_call.1} parent=11 // pred_fallthru
          _
        // Predicated region
        $region17: #{tpu_custom_call.1} parent=11 // pred_check
          %p395 = pneg %p152
        $region18: #{tpu_custom_call.1} parent=11 // pred_check_branch
          %397 = sbr.rel (%p395) target = $region20
        $region19: #{tpu_custom_call.1} parent=11 // pred_region
          %s399 = ssub.s32 1024, 1024
          %400 = vsyncadd [#allocation9], %s399
          %s401 = sshll.u32 [#allocation10], 4
          %s402 = int_to_ptr.vmem [resolvable:$true] %s401
          %407 = dma.hbm_to_vmem [thread:$0]  %s4, 1024, %s402, [#allocation9], 64, 64, 4
        $region20: #{tpu_custom_call.1} parent=11 // pred_fallthru
          _
        // Predicated region
        $region21: #{tpu_custom_call.1} parent=11 // pred_check
          %p408 = pneg %p173
        $region22: #{tpu_custom_call.1} parent=11 // pred_check_branch
          %410 = sbr.rel (%p408) target = $region24
        $region23: #{tpu_custom_call.1} parent=11 // pred_region
          %s412 = ssub.s32 3072, 3072
          %413 = vsyncadd [#allocation12], %s412
          %s414 = sshll.u32 [#allocation11], 4
          %s415 = int_to_ptr.vmem [resolvable:$true] %s414
          %420 = dma.hbm_to_vmem [thread:$0]  %s5, 3072, %s415, [#allocation12], 192, 192, 12
        $region24: #{tpu_custom_call.1} parent=11 // pred_fallthru
          _
        // Predicated region
        $region25: #{tpu_custom_call.1} parent=11 // pred_check
          %p421 = pneg %p194
        $region26: #{tpu_custom_call.1} parent=11 // pred_check_branch
          %423 = sbr.rel (%p421) target = $region28
        $region27: #{tpu_custom_call.1} parent=11 // pred_region
          %s425 = ssub.s32 3072, 3072
          %426 = vsyncadd [#allocation12], %s425
          %s427 = sshll.u32 [#allocation13], 4
          %s428 = int_to_ptr.vmem [resolvable:$true] %s427
          %433 = dma.hbm_to_vmem [thread:$0]  %s6, 3072, %s428, [#allocation12], 192, 192, 12
        $region28: #{tpu_custom_call.1} parent=11 // pred_fallthru
          _
        // Predicated region
        $region29: #{tpu_custom_call.1} parent=11 // pred_check
          %p434 = pneg %p215
        $region30: #{tpu_custom_call.1} parent=11 // pred_check_branch
          %436 = sbr.rel (%p434) target = $region32
        $region31: #{tpu_custom_call.1} parent=11 // pred_region
          %s438 = ssub.s32 3072, 3072
          %439 = vsyncadd [#allocation15], %s438
          %s440 = sshll.u32 [#allocation14], 4
          %s441 = int_to_ptr.vmem [resolvable:$true] %s440
          %446 = dma.hbm_to_vmem [thread:$0]  %s7, 3072, %s441, [#allocation15], 192, 192, 12
        $region32: #{tpu_custom_call.1} parent=11 // pred_fallthru
          _
        // Predicated region
        $region33: #{tpu_custom_call.1} parent=11 // pred_check
          %p447 = pneg %p236
        $region34: #{tpu_custom_call.1} parent=11 // pred_check_branch
          %449 = sbr.rel (%p447) target = $region36
        $region35: #{tpu_custom_call.1} parent=11 // pred_region
          _
        $region36: #{tpu_custom_call.1} parent=11 // pred_fallthru
          _
        // Predicated region
        $region37: #{tpu_custom_call.1} parent=11 // pred_check
          %p450 = pneg %p257
        $region38: #{tpu_custom_call.1} parent=11 // pred_check_branch
          %452 = sbr.rel (%p450) target = $region40
        $region39: #{tpu_custom_call.1} parent=11 // pred_region
          _
        $region40: #{tpu_custom_call.1} parent=11 // pred_fallthru
          _
        // Predicated region
        $region41: #{tpu_custom_call.1} parent=11 // pred_check
          %p453 = pneg %p278
        $region42: #{tpu_custom_call.1} parent=11 // pred_check_branch
          %455 = sbr.rel (%p453) target = $region44
        $region43: #{tpu_custom_call.1} parent=11 // pred_region
          _
        $region44: #{tpu_custom_call.1} parent=11 // pred_fallthru
          _
        // Predicated region
        $region45: #{tpu_custom_call.1} parent=11 // pred_check
          %p456 = pneg %p299
        $region46: #{tpu_custom_call.1} parent=11 // pred_check_branch
          %458 = sbr.rel (%p456) target = $region48
        $region47: #{tpu_custom_call.1} parent=11 // pred_region
          _
        $region48: #{tpu_custom_call.1} parent=11 // pred_fallthru
          _
        // Predicated region
        $region49: #{tpu_custom_call.1} parent=11 // pred_check
          %p459 = pneg %p320
        $region50: #{tpu_custom_call.1} parent=11 // pred_check_branch
          %461 = sbr.rel (%p459) target = $region52
        $region51: #{tpu_custom_call.1} parent=11 // pred_region
          _
        $region52: #{tpu_custom_call.1} parent=11 // pred_fallthru
          _
        // Predicated region
        $region53: #{tpu_custom_call.1} parent=11 // pred_check
          %p462 = pneg %p341
        $region54: #{tpu_custom_call.1} parent=11 // pred_check_branch
          %464 = sbr.rel (%p462) target = $region56
        $region55: #{tpu_custom_call.1} parent=11 // pred_region
          _
        $region56: #{tpu_custom_call.1} parent=11 // pred_fallthru
          _
      $region12: #{tpu_custom_call.1} parent=5 // pred_fallthru
        _
      %p465 = scmp.lt.s32.totalorder %s32, 2
      // Predicated region
      $region57: #{tpu_custom_call.1} parent=5 // pred_check
        %p466 = pneg %p465
      $region58: #{tpu_custom_call.1} parent=5 // pred_check_branch
        %468 = sbr.rel (%p466) target = $region60
      $region59: #{tpu_custom_call.1} parent=5 // pred_region
        // Predicated region
        $region61: #{tpu_custom_call.1} parent=59 // pred_check
          %p469 = pneg %p52
        $region62: #{tpu_custom_call.1} parent=59 // pred_check_branch
          %471 = sbr.rel (%p469) target = $region64
        $region63: #{tpu_custom_call.1} parent=59 // pred_region
          %s472 = sand.u32 %s42, 1
          %s473 = scalar_lea.sflag [#allocation3], %s472
          %s474 = sand.u32 %s42, 1
          %s475 = smul.addr %s474, 8
          %s476 = scalar_lea.vmem [#allocation2], %s475
          %s478 = ssub.s32 128, 128
          %479 = vsyncadd %s473, %s478
          %s480 = smul.addr %s32, 128
          %s481 = scalar_lea.hbm %s0, %s480
          %s483 = sshll.u32 %s476, 4
          %s484 = int_to_ptr.vmem [resolvable:$true] %s483
          %486 = dma.hbm_to_vmem [thread:$0]  %s481, 128, %s484, %s473
        $region64: #{tpu_custom_call.1} parent=59 // pred_fallthru
          _
        // Predicated region
        $region65: #{tpu_custom_call.1} parent=59 // pred_check
          %p487 = pneg %p78
        $region66: #{tpu_custom_call.1} parent=59 // pred_check_branch
          %489 = sbr.rel (%p487) target = $region68
        $region67: #{tpu_custom_call.1} parent=59 // pred_region
          %s490 = sand.u32 %s32, 1
          %s491 = scalar_lea.sflag [#allocation6], %s490
          %s492 = sand.u32 %s68, 1
          %s493 = smul.addr %s492, 8
          %s494 = scalar_lea.vmem [#allocation5], %s493
          %s496 = ssub.s32 128, 128
          %497 = vsyncadd %s491, %s496
          %s498 = smul.addr %s32, 128
          %s499 = scalar_lea.hbm %s1, %s498
          %s501 = sshll.u32 %s494, 4
          %s502 = int_to_ptr.vmem [resolvable:$true] %s501
          %504 = dma.hbm_to_vmem [thread:$0]  %s499, 128, %s502, %s491
        $region68: #{tpu_custom_call.1} parent=59 // pred_fallthru
          _
        // Predicated region
        $region69: #{tpu_custom_call.1} parent=59 // pred_check
          %p505 = pneg %p104
        $region70: #{tpu_custom_call.1} parent=59 // pred_check_branch
          %507 = sbr.rel (%p505) target = $region72
        $region71: #{tpu_custom_call.1} parent=59 // pred_region
          %s508 = sand.u32 %s32, 1
          %s509 = scalar_lea.sflag [#allocation6], %s508
          %s510 = sand.u32 %s94, 1
          %s511 = smul.addr %s510, 8
          %s512 = scalar_lea.vmem [#allocation7], %s511
          %s514 = ssub.s32 128, 128
          %515 = vsyncadd %s509, %s514
          %s516 = smul.addr %s32, 128
          %s517 = scalar_lea.hbm %s2, %s516
          %s519 = sshll.u32 %s512, 4
          %s520 = int_to_ptr.vmem [resolvable:$true] %s519
          %522 = dma.hbm_to_vmem [thread:$0]  %s517, 128, %s520, %s509
        $region72: #{tpu_custom_call.1} parent=59 // pred_fallthru
          _
      $region60: #{tpu_custom_call.1} parent=5 // pred_fallthru
        _
      %p523 = scmp.le.s32.totalorder 1, %s32
      %p524 = scmp.lt.s32.totalorder %s32, 3
      %p525 = pnand %p523, %p524
      %p526 = pneg %p525
      // Predicated region
      $region73: #{tpu_custom_call.1} parent=5 // pred_check
        _
      $region74: #{tpu_custom_call.1} parent=5 // pred_check_branch
        %528 = sbr.rel (%p525) target = $region76
      $region75: #{tpu_custom_call.1} parent=5 // pred_region
        %s529 = ssub.s32 %s32, 1
        %s530 = sand.u32 %s45, 1
        %s531 = scalar_lea.sflag [#allocation3], %s530
        %s532 = sand.u32 %s45, 1
        %s533 = smul.addr %s532, 8
        %s534 = scalar_lea.vmem [#allocation2], %s533
        // Predicated region
        $region77: #{tpu_custom_call.1} parent=75 // pred_check
          %p535 = pneg %p58
        $region78: #{tpu_custom_call.1} parent=75 // pred_check_branch
          %537 = sbr.rel (%p535) target = $region80
        $region79: #{tpu_custom_call.1} parent=75 // pred_region
          %538 = dma.done %s531, 128
        $region80: #{tpu_custom_call.1} parent=75 // pred_fallthru
          _
        %s539 = sand.u32 %s37, 1
        %s540 = scalar_lea.sflag [#allocation6], %s539
        %s541 = sand.u32 %s71, 1
        %s542 = smul.addr %s541, 8
        %s543 = scalar_lea.vmem [#allocation5], %s542
        // Predicated region
        $region81: #{tpu_custom_call.1} parent=75 // pred_check
          %p544 = pneg %p84
        $region82: #{tpu_custom_call.1} parent=75 // pred_check_branch
          %546 = sbr.rel (%p544) target = $region84
        $region83: #{tpu_custom_call.1} parent=75 // pred_region
          %547 = dma.done %s540, 128
        $region84: #{tpu_custom_call.1} parent=75 // pred_fallthru
          _
        %s548 = sand.u32 %s37, 1
        %s549 = scalar_lea.sflag [#allocation6], %s548
        %s550 = sand.u32 %s97, 1
        %s551 = smul.addr %s550, 8
        %s552 = scalar_lea.vmem [#allocation7], %s551
        // Predicated region
        $region85: #{tpu_custom_call.1} parent=75 // pred_check
          %p553 = pneg %p110
        $region86: #{tpu_custom_call.1} parent=75 // pred_check_branch
          %555 = sbr.rel (%p553) target = $region88
        $region87: #{tpu_custom_call.1} parent=75 // pred_region
          %556 = dma.done %s549, 128
        $region88: #{tpu_custom_call.1} parent=75 // pred_fallthru
          _
        // Predicated region
        $region89: #{tpu_custom_call.1} parent=75 // pred_check
          %p557 = pneg %p131
        $region90: #{tpu_custom_call.1} parent=75 // pred_check_branch
          %559 = sbr.rel (%p557) target = $region92
        $region91: #{tpu_custom_call.1} parent=75 // pred_region
          %560 = dma.done [#allocation9], 1024
        $region92: #{tpu_custom_call.1} parent=75 // pred_fallthru
          _
        // Predicated region
        $region93: #{tpu_custom_call.1} parent=75 // pred_check
          %p561 = pneg %p152
        $region94: #{tpu_custom_call.1} parent=75 // pred_check_branch
          %563 = sbr.rel (%p561) target = $region96
        $region95: #{tpu_custom_call.1} parent=75 // pred_region
          %564 = dma.done [#allocation9], 1024
        $region96: #{tpu_custom_call.1} parent=75 // pred_fallthru
          _
        // Predicated region
        $region97: #{tpu_custom_call.1} parent=75 // pred_check
          %p565 = pneg %p173
        $region98: #{tpu_custom_call.1} parent=75 // pred_check_branch
          %567 = sbr.rel (%p565) target = $region100
        $region99: #{tpu_custom_call.1} parent=75 // pred_region
          %568 = dma.done [#allocation12], 3072
        $region100: #{tpu_custom_call.1} parent=75 // pred_fallthru
          _
        // Predicated region
        $region101: #{tpu_custom_call.1} parent=75 // pred_check
          %p569 = pneg %p194
        $region102: #{tpu_custom_call.1} parent=75 // pred_check_branch
          %571 = sbr.rel (%p569) target = $region104
        $region103: #{tpu_custom_call.1} parent=75 // pred_region
          %572 = dma.done [#allocation12], 3072
        $region104: #{tpu_custom_call.1} parent=75 // pred_fallthru
          _
        // Predicated region
        $region105: #{tpu_custom_call.1} parent=75 // pred_check
          %p573 = pneg %p215
        $region106: #{tpu_custom_call.1} parent=75 // pred_check_branch
          %575 = sbr.rel (%p573) target = $region108
        $region107: #{tpu_custom_call.1} parent=75 // pred_region
          %576 = dma.done [#allocation15], 3072
        $region108: #{tpu_custom_call.1} parent=75 // pred_fallthru
          _
        %s577 = sand.u32 %s45, 1
        %s578 = scalar_lea.sflag [#allocation3], %s577
        %s579 = sand.u32 %s45, 1
        %s580 = smul.addr %s579, 8
        %s581 = scalar_lea.vmem [#allocation2], %s580
        %p582 = pneg %p58
        %p583 = pneg %p55
        %s584 = sand.u32 %s37, 1
        %s585 = scalar_lea.sflag [#allocation6], %s584
        %s586 = sand.u32 %s71, 1
        %s587 = smul.addr %s586, 8
        %s588 = scalar_lea.vmem [#allocation5], %s587
        %p589 = pneg %p84
        %p590 = pneg %p81
        %s591 = sand.u32 %s37, 1
        %s592 = scalar_lea.sflag [#allocation6], %s591
        %s593 = sand.u32 %s97, 1
        %s594 = smul.addr %s593, 8
        %s595 = scalar_lea.vmem [#allocation7], %s594
        %p596 = pneg %p110
        %p597 = pneg %p107
        %p598 = pneg %p131
        %p599 = pneg %p128
        %p600 = pneg %p152
        %p601 = pneg %p149
        %p602 = pneg %p173
        %p603 = pneg %p170
        %p604 = pneg %p194
        %p605 = pneg %p191
        %p606 = pneg %p215
        %p607 = pneg %p212
        %p608 = pneg %p236
        %p609 = pneg %p233
        %p610 = pneg %p257
        %p611 = pneg %p254
        %p612 = pneg %p278
        %p613 = pneg %p275
        %p614 = pneg %p299
        %p615 = pneg %p296
        %p616 = pneg %p320
        %p617 = pneg %p317
        %p618 = pneg %p341
        %p619 = pneg %p338
        %p620 = pneg %p367
        %p621 = pneg %p364
        %s622 = sand.u32 %s354, 1
        %s623 = scalar_lea.sflag [#allocation4], %s622
        %s624 = sand.u32 %s354, 1
        %s625 = smul.addr %s624, 8
        %s626 = scalar_lea.vmem [#allocation16], %s625
        %v628 = vld [vmem:[#allocation8] sm:$0xf]
        %v629 = vld [vmem:[#allocation8 + $0x4] sm:$0xf]
        %v630 = vld [vmem:[#allocation8 + $0x8] sm:$0xf]
        %v631 = vld [vmem:[#allocation8 + $0xc] sm:$0xf]
        %v632 = vld [vmem:[#allocation8 + $0x10] sm:$0xf]
        %v633 = vld [vmem:[#allocation8 + $0x14] sm:$0xf]
        %v634 = vld [vmem:[#allocation8 + $0x18] sm:$0xf]
        %v635 = vld [vmem:[#allocation8 + $0x1c] sm:$0xf]
        %v636 = vld [vmem:[#allocation8 + $0x20] sm:$0xf]
        %v637 = vld [vmem:[#allocation8 + $0x24] sm:$0xf]
        %v638 = vld [vmem:[#allocation8 + $0x28] sm:$0xf]
        %v639 = vld [vmem:[#allocation8 + $0x2c] sm:$0xf]
        %v640 = vld [vmem:[#allocation8 + $0x30] sm:$0xf]
        %v641 = vld [vmem:[#allocation8 + $0x34] sm:$0xf]
        %v642 = vld [vmem:[#allocation8 + $0x38] sm:$0xf]
        %v643 = vld [vmem:[#allocation8 + $0x3c] sm:$0xf]
        %v644 = vld [vmem:[#allocation10] sm:$0xf]
        %v645 = vld [vmem:[#allocation10 + $0x4] sm:$0xf]
        %v646 = vld [vmem:[#allocation10 + $0x8] sm:$0xf]
        %v647 = vld [vmem:[#allocation10 + $0xc] sm:$0xf]
        %v648 = vld [vmem:[#allocation10 + $0x10] sm:$0xf]
        %v649 = vld [vmem:[#allocation10 + $0x14] sm:$0xf]
        %v650 = vld [vmem:[#allocation10 + $0x18] sm:$0xf]
        %v651 = vld [vmem:[#allocation10 + $0x1c] sm:$0xf]
        %v652 = vld [vmem:[#allocation10 + $0x20] sm:$0xf]
        %v653 = vld [vmem:[#allocation10 + $0x24] sm:$0xf]
        %v654 = vld [vmem:[#allocation10 + $0x28] sm:$0xf]
        %v655 = vld [vmem:[#allocation10 + $0x2c] sm:$0xf]
        %v656 = vld [vmem:[#allocation10 + $0x30] sm:$0xf]
        %v657 = vld [vmem:[#allocation10 + $0x34] sm:$0xf]
        %v658 = vld [vmem:[#allocation10 + $0x38] sm:$0xf]
        %v659 = vld [vmem:[#allocation10 + $0x3c] sm:$0xf]
        %v660 = vld [vmem:[#allocation11] sm:$0xff]
        %v661 = vld [vmem:[#allocation11 + $0x8] sm:$0xf]
        %v662 = vld [vmem:[#allocation11 + $0xc] sm:$0xff]
        %v663 = vld [vmem:[#allocation11 + $0x14] sm:$0xf]
        %v664 = vld [vmem:[#allocation11 + $0x18] sm:$0xff]
        %v665 = vld [vmem:[#allocation11 + $0x20] sm:$0xf]
        %v666 = vld [vmem:[#allocation11 + $0x24] sm:$0xff]
        %v667 = vld [vmem:[#allocation11 + $0x2c] sm:$0xf]
        %v668 = vld [vmem:[#allocation11 + $0x30] sm:$0xff]
        %v669 = vld [vmem:[#allocation11 + $0x38] sm:$0xf]
        %v670 = vld [vmem:[#allocation11 + $0x3c] sm:$0xff]
        %v671 = vld [vmem:[#allocation11 + $0x44] sm:$0xf]
        %v672 = vld [vmem:[#allocation11 + $0x48] sm:$0xff]
        %v673 = vld [vmem:[#allocation11 + $0x50] sm:$0xf]
        %v674 = vld [vmem:[#allocation11 + $0x54] sm:$0xff]
        %v675 = vld [vmem:[#allocation11 + $0x5c] sm:$0xf]
        %v676 = vld [vmem:[#allocation11 + $0x60] sm:$0xff]
        %v677 = vld [vmem:[#allocation11 + $0x68] sm:$0xf]
        %v678 = vld [vmem:[#allocation11 + $0x6c] sm:$0xff]
        %v679 = vld [vmem:[#allocation11 + $0x74] sm:$0xf]
        %v680 = vld [vmem:[#allocation11 + $0x78] sm:$0xff]
        %v681 = vld [vmem:[#allocation11 + $0x80] sm:$0xf]
        %v682 = vld [vmem:[#allocation11 + $0x84] sm:$0xff]
        %v683 = vld [vmem:[#allocation11 + $0x8c] sm:$0xf]
        %v684 = vld [vmem:[#allocation11 + $0x90] sm:$0xff]
        %v685 = vld [vmem:[#allocation11 + $0x98] sm:$0xf]
        %v686 = vld [vmem:[#allocation11 + $0x9c] sm:$0xff]
        %v687 = vld [vmem:[#allocation11 + $0xa4] sm:$0xf]
        %v688 = vld [vmem:[#allocation11 + $0xa8] sm:$0xff]
        %v689 = vld [vmem:[#allocation11 + $0xb0] sm:$0xf]
        %v690 = vld [vmem:[#allocation11 + $0xb4] sm:$0xff]
        %v691 = vld [vmem:[#allocation11 + $0xbc] sm:$0xf]
        %v692 = vld [vmem:[#allocation13] sm:$0xff]
        %v693 = vld [vmem:[#allocation13 + $0x8] sm:$0xf]
        %v694 = vld [vmem:[#allocation13 + $0xc] sm:$0xff]
        %v695 = vld [vmem:[#allocation13 + $0x14] sm:$0xf]
        %v696 = vld [vmem:[#allocation13 + $0x18] sm:$0xff]
        %v697 = vld [vmem:[#allocation13 + $0x20] sm:$0xf]
        %v698 = vld [vmem:[#allocation13 + $0x24] sm:$0xff]
        %v699 = vld [vmem:[#allocation13 + $0x2c] sm:$0xf]
        %v700 = vld [vmem:[#allocation13 + $0x30] sm:$0xff]
        %v701 = vld [vmem:[#allocation13 + $0x38] sm:$0xf]
        %v702 = vld [vmem:[#allocation13 + $0x3c] sm:$0xff]
        %v703 = vld [vmem:[#allocation13 + $0x44] sm:$0xf]
        %v704 = vld [vmem:[#allocation13 + $0x48] sm:$0xff]
        %v705 = vld [vmem:[#allocation13 + $0x50] sm:$0xf]
        %v706 = vld [vmem:[#allocation13 + $0x54] sm:$0xff]
        %v707 = vld [vmem:[#allocation13 + $0x5c] sm:$0xf]
        %v708 = vld [vmem:[#allocation13 + $0x60] sm:$0xff]
        %v709 = vld [vmem:[#allocation13 + $0x68] sm:$0xf]
        %v710 = vld [vmem:[#allocation13 + $0x6c] sm:$0xff]
        %v711 = vld [vmem:[#allocation13 + $0x74] sm:$0xf]
        %v712 = vld [vmem:[#allocation13 + $0x78] sm:$0xff]
        %v713 = vld [vmem:[#allocation13 + $0x80] sm:$0xf]
        %v714 = vld [vmem:[#allocation13 + $0x84] sm:$0xff]
        %v715 = vld [vmem:[#allocation13 + $0x8c] sm:$0xf]
        %v716 = vld [vmem:[#allocation13 + $0x90] sm:$0xff]
        %v717 = vld [vmem:[#allocation13 + $0x98] sm:$0xf]
        %v718 = vld [vmem:[#allocation13 + $0x9c] sm:$0xff]
        %v719 = vld [vmem:[#allocation13 + $0xa4] sm:$0xf]
        %v720 = vld [vmem:[#allocation13 + $0xa8] sm:$0xff]
        %v721 = vld [vmem:[#allocation13 + $0xb0] sm:$0xf]
        %v722 = vld [vmem:[#allocation13 + $0xb4] sm:$0xff]
        %v723 = vld [vmem:[#allocation13 + $0xbc] sm:$0xf]
        %v724 = vld [vmem:[#allocation14] sm:$0xff]
        %v725 = vld [vmem:[#allocation14 + $0x8] sm:$0xf]
        %v726 = vld [vmem:[#allocation14 + $0xc] sm:$0xff]
        %v727 = vld [vmem:[#allocation14 + $0x14] sm:$0xf]
        %v728 = vld [vmem:[#allocation14 + $0x18] sm:$0xff]
        %v729 = vld [vmem:[#allocation14 + $0x20] sm:$0xf]
        %v730 = vld [vmem:[#allocation14 + $0x24] sm:$0xff]
        %v731 = vld [vmem:[#allocation14 + $0x2c] sm:$0xf]
        %v732 = vld [vmem:[#allocation14 + $0x30] sm:$0xff]
        %v733 = vld [vmem:[#allocation14 + $0x38] sm:$0xf]
        %v734 = vld [vmem:[#allocation14 + $0x3c] sm:$0xff]
        %v735 = vld [vmem:[#allocation14 + $0x44] sm:$0xf]
        %v736 = vld [vmem:[#allocation14 + $0x48] sm:$0xff]
        %v737 = vld [vmem:[#allocation14 + $0x50] sm:$0xf]
        %v738 = vld [vmem:[#allocation14 + $0x54] sm:$0xff]
        %v739 = vld [vmem:[#allocation14 + $0x5c] sm:$0xf]
        %v740 = vld [vmem:[#allocation14 + $0x60] sm:$0xff]
        %v741 = vld [vmem:[#allocation14 + $0x68] sm:$0xf]
        %v742 = vld [vmem:[#allocation14 + $0x6c] sm:$0xff]
        %v743 = vld [vmem:[#allocation14 + $0x74] sm:$0xf]
        %v744 = vld [vmem:[#allocation14 + $0x78] sm:$0xff]
        %v745 = vld [vmem:[#allocation14 + $0x80] sm:$0xf]
        %v746 = vld [vmem:[#allocation14 + $0x84] sm:$0xff]
        %v747 = vld [vmem:[#allocation14 + $0x8c] sm:$0xf]
        %v748 = vld [vmem:[#allocation14 + $0x90] sm:$0xff]
        %v749 = vld [vmem:[#allocation14 + $0x98] sm:$0xf]
        %v750 = vld [vmem:[#allocation14 + $0x9c] sm:$0xff]
        %v751 = vld [vmem:[#allocation14 + $0xa4] sm:$0xf]
        %v752 = vld [vmem:[#allocation14 + $0xa8] sm:$0xff]
        %v753 = vld [vmem:[#allocation14 + $0xb0] sm:$0xf]
        %v754 = vld [vmem:[#allocation14 + $0xb4] sm:$0xff]
        %v755 = vld [vmem:[#allocation14 + $0xbc] sm:$0xf]
        %v756 = vld [vmem:[%s8] sm:$0x1]
        %v757 = vld [vmem:[%s9] sm:$0x1]
        %v758 = vld [vmem:[%s10] sm:$0x1]
        %v759 = vld [vmem:[%s11] sm:$0x1]
        %v760 = vld [vmem:[%s12] sm:$0x1]
        %v761 = vld [vmem:[%s13] sm:$0x1]
        %v762 = vld [vmem:[%s534] sm:$0xff]
        %v763 = vld [vmem:[%s543] sm:$0xff]
        %v764 = vld [vmem:[%s552] sm:$0xff]
        %v765 = vpack.c.bf16 %v764, %v764
        %v767 = vlaneseq
        %v768 = vshrl.u32 %v767, 7
        %v769 = vsub.s32 0, %v768
        %v770 = vrot.slane %v756, %v769
        %v788 = vunpack.c.l.b16 %v628
        %v789 = vunpack.c.l.b16 %v629
        %v790 = vunpack.c.l.b16 %v630
        %v791 = vunpack.c.l.b16 %v631
        %v792 = vunpack.c.l.b16 %v632
        %v793 = vunpack.c.l.b16 %v633
        %v794 = vunpack.c.l.b16 %v634
        %v795 = vunpack.c.l.b16 %v635
        %v796 = vunpack.c.l.b16 %v636
        %v797 = vunpack.c.l.b16 %v637
        %v798 = vunpack.c.l.b16 %v638
        %v799 = vunpack.c.l.b16 %v639
        %v800 = vunpack.c.l.b16 %v640
        %v801 = vunpack.c.l.b16 %v641
        %v802 = vunpack.c.l.b16 %v642
        %v803 = vunpack.c.l.b16 %v643
        %v804 = vpack.c.b16 %v789, %v788
        %v805 = vpack.c.b16 %v791, %v790
        %v806 = vpack.c.b16 %v793, %v792
        %v807 = vpack.c.b16 %v795, %v794
        %v808 = vpack.c.b16 %v797, %v796
        %v809 = vpack.c.b16 %v799, %v798
        %v810 = vpack.c.b16 %v801, %v800
        %v811 = vpack.c.b16 %v803, %v802
        %820 = vmatprep.subr.bf16.mxu0 0
        %821 = vmatpush1.bf16.msra.mxu0 %v804
        %822 = vmatprep.subr.bf16.mxu0 0
        %823 = vmatpush1.bf16.msra.mxu0 %v805
        %824 = vmatprep.subr.bf16.mxu0 0
        %825 = vmatpush1.bf16.msra.mxu0 %v806
        %826 = vmatprep.subr.bf16.mxu0 0
        %827 = vmatpush1.bf16.msra.mxu0 %v807
        %828 = vmatprep.subr.bf16.mxu0 0
        %829 = vmatpush1.bf16.msra.mxu0 %v808
        %830 = vmatprep.subr.bf16.mxu0 0
        %831 = vmatpush1.bf16.msra.mxu0 %v809
        %832 = vmatprep.subr.bf16.mxu0 0
        %833 = vmatpush1.bf16.msra.mxu0 %v810
        %834 = vmatprep.subr.bf16.mxu0 0
        %835 = vmatpush1.bf16.msra.mxu0 %v811
        %836 = vmatprep.subr.bf16.mxu0 0
        %837 = vmatpush1.bf16.msra.mxu0 0
        %838 = vmatprep.subr.bf16.mxu0 0
        %839 = vmatpush1.bf16.msra.mxu0 0
        %840 = vmatprep.subr.bf16.mxu0 0
        %841 = vmatpush1.bf16.msra.mxu0 0
        %842 = vmatprep.subr.bf16.mxu0 0
        %843 = vmatpush1.bf16.msra.mxu0 0
        %844 = vmatprep.subr.bf16.mxu0 0
        %845 = vmatpush1.bf16.msra.mxu0 0
        %846 = vmatprep.subr.bf16.mxu0 0
        %847 = vmatpush1.bf16.msra.mxu0 0
        %848 = vmatprep.subr.bf16.mxu0 0
        %849 = vmatpush1.bf16.msra.mxu0 0
        %850 = vmatprep.subr.bf16.mxu0 0
        %851 = vmatpush1.bf16.msra.mxu0 0
        %852 = vmatprep.mubr.bf16.mxu0 0
        %853 = vmatmul.mubr.bf16.gmra.mrb[0].mxu0 %v765
        %v854 = vpop.f32.mrb[0].mxu0
        %v855 = vadd.f32 %v770, %v854
        %v856 = vpop.f32.mrb[0].mxu0
        %v857 = vpop.f32.mrb[0].mxu0
        %v858 = vpop.f32.mrb[0].mxu0
        %859 = vdwg.mxu0
        %v861 = vlaneseq
        %v862 = vshrl.u32 %v861, 7
        %v863 = vsub.s32 0, %v862
        %v864 = vrot.slane %v757, %v863
        %v882 = vunpack.c.l.b16 %v644
        %v883 = vunpack.c.l.b16 %v645
        %v884 = vunpack.c.l.b16 %v646
        %v885 = vunpack.c.l.b16 %v647
        %v886 = vunpack.c.l.b16 %v648
        %v887 = vunpack.c.l.b16 %v649
        %v888 = vunpack.c.l.b16 %v650
        %v889 = vunpack.c.l.b16 %v651
        %v890 = vunpack.c.l.b16 %v652
        %v891 = vunpack.c.l.b16 %v653
        %v892 = vunpack.c.l.b16 %v654
        %v893 = vunpack.c.l.b16 %v655
        %v894 = vunpack.c.l.b16 %v656
        %v895 = vunpack.c.l.b16 %v657
        %v896 = vunpack.c.l.b16 %v658
        %v897 = vunpack.c.l.b16 %v659
        %v898 = vpack.c.b16 %v883, %v882
        %v899 = vpack.c.b16 %v885, %v884
        %v900 = vpack.c.b16 %v887, %v886
        %v901 = vpack.c.b16 %v889, %v888
        %v902 = vpack.c.b16 %v891, %v890
        %v903 = vpack.c.b16 %v893, %v892
        %v904 = vpack.c.b16 %v895, %v894
        %v905 = vpack.c.b16 %v897, %v896
        %914 = vmatprep.subr.bf16.mxu0 0
        %915 = vmatpush1.bf16.msra.mxu0 %v898
        %916 = vmatprep.subr.bf16.mxu0 0
        %917 = vmatpush1.bf16.msra.mxu0 %v899
        %918 = vmatprep.subr.bf16.mxu0 0
        %919 = vmatpush1.bf16.msra.mxu0 %v900
        %920 = vmatprep.subr.bf16.mxu0 0
        %921 = vmatpush1.bf16.msra.mxu0 %v901
        %922 = vmatprep.subr.bf16.mxu0 0
        %923 = vmatpush1.bf16.msra.mxu0 %v902
        %924 = vmatprep.subr.bf16.mxu0 0
        %925 = vmatpush1.bf16.msra.mxu0 %v903
        %926 = vmatprep.subr.bf16.mxu0 0
        %927 = vmatpush1.bf16.msra.mxu0 %v904
        %928 = vmatprep.subr.bf16.mxu0 0
        %929 = vmatpush1.bf16.msra.mxu0 %v905
        %930 = vmatprep.subr.bf16.mxu0 0
        %931 = vmatpush1.bf16.msra.mxu0 0
        %932 = vmatprep.subr.bf16.mxu0 0
        %933 = vmatpush1.bf16.msra.mxu0 0
        %934 = vmatprep.subr.bf16.mxu0 0
        %935 = vmatpush1.bf16.msra.mxu0 0
        %936 = vmatprep.subr.bf16.mxu0 0
        %937 = vmatpush1.bf16.msra.mxu0 0
        %938 = vmatprep.subr.bf16.mxu0 0
        %939 = vmatpush1.bf16.msra.mxu0 0
        %940 = vmatprep.subr.bf16.mxu0 0
        %941 = vmatpush1.bf16.msra.mxu0 0
        %942 = vmatprep.subr.bf16.mxu0 0
        %943 = vmatpush1.bf16.msra.mxu0 0
        %944 = vmatprep.subr.bf16.mxu0 0
        %945 = vmatpush1.bf16.msra.mxu0 0
        %946 = vmatprep.mubr.bf16.mxu0 0
        %947 = vmatmul.mubr.bf16.gmra.mrb[0].mxu0 %v765
        %v948 = vpop.f32.mrb[0].mxu0
        %v949 = vadd.f32 %v864, %v948
        %v950 = vpop.f32.mrb[0].mxu0
        %v951 = vpop.f32.mrb[0].mxu0
        %v952 = vpop.f32.mrb[0].mxu0
        %953 = vdwg.mxu0
        %vm954 = vcmask 64512
        %v956 = vsel %vm954, %v762, 0
        %958 = vmatprep.subr.mxu0 0.0
        %959 = vmatpush1.msra.mxu0 %v855
        %960 = vmatprep.subr.mxu0 0.0
        %961 = vmatpush1.msra.mxu0 0.0
        %962 = vmatprep.subr.mxu0 0.0
        %963 = vmatpush1.msra.mxu0 0.0
        %964 = vmatprep.subr.mxu0 0.0
        %965 = vmatpush1.msra.mxu0 0.0
        %966 = vmatprep.subr.mxu0 0.0
        %967 = vmatpush1.msra.mxu0 0.0
        %968 = vmatprep.subr.mxu0 0.0
        %969 = vmatpush1.msra.mxu0 0.0
        %970 = vmatprep.subr.mxu0 0.0
        %971 = vmatpush1.msra.mxu0 0.0
        %972 = vmatprep.subr.mxu0 0.0
        %973 = vmatpush1.msra.mxu0 0.0
        %974 = vmatprep.subr.mxu0 0.0
        %975 = vmatpush1.msra.mxu0 0.0
        %976 = vmatprep.subr.mxu0 0.0
        %977 = vmatpush1.msra.mxu0 0.0
        %978 = vmatprep.subr.mxu0 0.0
        %979 = vmatpush1.msra.mxu0 0.0
        %980 = vmatprep.subr.mxu0 0.0
        %981 = vmatpush1.msra.mxu0 0.0
        %982 = vmatprep.subr.mxu0 0.0
        %983 = vmatpush1.msra.mxu0 0.0
        %984 = vmatprep.subr.mxu0 0.0
        %985 = vmatpush1.msra.mxu0 0.0
        %986 = vmatprep.subr.mxu0 0.0
        %987 = vmatpush1.msra.mxu0 0.0
        %988 = vmatprep.subr.mxu0 0.0
        %989 = vmatpush1.msra.mxu0 0.0
        %990 = vmatprep.subr.mxu0 0.0
        %991 = vmatpush1.msra.mxu0 0.0
        %992 = vmatprep.subr.mxu0 0.0
        %993 = vmatpush1.msra.mxu0 0.0
        %994 = vmatprep.subr.mxu0 0.0
        %995 = vmatpush1.msra.mxu0 0.0
        %996 = vmatprep.subr.mxu0 0.0
        %997 = vmatpush1.msra.mxu0 0.0
        %998 = vmatprep.subr.mxu0 0.0
        %999 = vmatpush1.msra.mxu0 0.0
        %1000 = vmatprep.subr.mxu0 0.0
        %1001 = vmatpush1.msra.mxu0 0.0
        %1002 = vmatprep.subr.mxu0 0.0
        %1003 = vmatpush1.msra.mxu0 0.0
        %1004 = vmatprep.subr.mxu0 0.0
        %1005 = vmatpush1.msra.mxu0 0.0
        %1006 = vmatprep.subr.mxu0 0.0
        %1007 = vmatpush1.msra.mxu0 0.0
        %1008 = vmatprep.subr.mxu0 0.0
        %1009 = vmatpush1.msra.mxu0 0.0
        %1010 = vmatprep.subr.mxu0 0.0
        %1011 = vmatpush1.msra.mxu0 0.0
        %1012 = vmatprep.subr.mxu0 0.0
        %1013 = vmatpush1.msra.mxu0 0.0
        %1014 = vmatprep.subr.mxu0 0.0
        %1015 = vmatpush1.msra.mxu0 0.0
        %1016 = vmatprep.subr.mxu0 0.0
        %1017 = vmatpush1.msra.mxu0 0.0
        %1018 = vmatprep.subr.mxu0 0.0
        %1019 = vmatpush1.msra.mxu0 0.0
        %1020 = vmatprep.subr.mxu0 0.0
        %1021 = vmatpush1.msra.mxu0 0.0
        %1022 = vmatprep.mubr.f32.mxu0 0.0
        %1023 = vmatmul.mubr.f32.gmra.mrb[0].mxu0 %v956
        %v1024 = vpop.f32.mrb[0].mxu0
        %v1025 = vadd.f32 0.0, %v1024
        %v1026 = vpop.f32.mrb[0].mxu0
        %1027 = vdwg.mxu0
        %v1029 = vsel %vm954, %v763, 0
        %1031 = vmatprep.subr.mxu0 0.0
        %1032 = vmatpush1.msra.mxu0 %v949
        %1033 = vmatprep.subr.mxu0 0.0
        %1034 = vmatpush1.msra.mxu0 0.0
        %1035 = vmatprep.subr.mxu0 0.0
        %1036 = vmatpush1.msra.mxu0 0.0
        %1037 = vmatprep.subr.mxu0 0.0
        %1038 = vmatpush1.msra.mxu0 0.0
        %1039 = vmatprep.subr.mxu0 0.0
        %1040 = vmatpush1.msra.mxu0 0.0
        %1041 = vmatprep.subr.mxu0 0.0
        %1042 = vmatpush1.msra.mxu0 0.0
        %1043 = vmatprep.subr.mxu0 0.0
        %1044 = vmatpush1.msra.mxu0 0.0
        %1045 = vmatprep.subr.mxu0 0.0
        %1046 = vmatpush1.msra.mxu0 0.0
        %1047 = vmatprep.subr.mxu0 0.0
        %1048 = vmatpush1.msra.mxu0 0.0
        %1049 = vmatprep.subr.mxu0 0.0
        %1050 = vmatpush1.msra.mxu0 0.0
        %1051 = vmatprep.subr.mxu0 0.0
        %1052 = vmatpush1.msra.mxu0 0.0
        %1053 = vmatprep.subr.mxu0 0.0
        %1054 = vmatpush1.msra.mxu0 0.0
        %1055 = vmatprep.subr.mxu0 0.0
        %1056 = vmatpush1.msra.mxu0 0.0
        %1057 = vmatprep.subr.mxu0 0.0
        %1058 = vmatpush1.msra.mxu0 0.0
        %1059 = vmatprep.subr.mxu0 0.0
        %1060 = vmatpush1.msra.mxu0 0.0
        %1061 = vmatprep.subr.mxu0 0.0
        %1062 = vmatpush1.msra.mxu0 0.0
        %1063 = vmatprep.subr.mxu0 0.0
        %1064 = vmatpush1.msra.mxu0 0.0
        %1065 = vmatprep.subr.mxu0 0.0
        %1066 = vmatpush1.msra.mxu0 0.0
        %1067 = vmatprep.subr.mxu0 0.0
        %1068 = vmatpush1.msra.mxu0 0.0
        %1069 = vmatprep.subr.mxu0 0.0
        %1070 = vmatpush1.msra.mxu0 0.0
        %1071 = vmatprep.subr.mxu0 0.0
        %1072 = vmatpush1.msra.mxu0 0.0
        %1073 = vmatprep.subr.mxu0 0.0
        %1074 = vmatpush1.msra.mxu0 0.0
        %1075 = vmatprep.subr.mxu0 0.0
        %1076 = vmatpush1.msra.mxu0 0.0
        %1077 = vmatprep.subr.mxu0 0.0
        %1078 = vmatpush1.msra.mxu0 0.0
        %1079 = vmatprep.subr.mxu0 0.0
        %1080 = vmatpush1.msra.mxu0 0.0
        %1081 = vmatprep.subr.mxu0 0.0
        %1082 = vmatpush1.msra.mxu0 0.0
        %1083 = vmatprep.subr.mxu0 0.0
        %1084 = vmatpush1.msra.mxu0 0.0
        %1085 = vmatprep.subr.mxu0 0.0
        %1086 = vmatpush1.msra.mxu0 0.0
        %1087 = vmatprep.subr.mxu0 0.0
        %1088 = vmatpush1.msra.mxu0 0.0
        %1089 = vmatprep.subr.mxu0 0.0
        %1090 = vmatpush1.msra.mxu0 0.0
        %1091 = vmatprep.subr.mxu0 0.0
        %1092 = vmatpush1.msra.mxu0 0.0
        %1093 = vmatprep.subr.mxu0 0.0
        %1094 = vmatpush1.msra.mxu0 0.0
        %1095 = vmatprep.mubr.f32.mxu0 0.0
        %1096 = vmatmul.mubr.f32.gmra.mrb[0].mxu0 %v1029
        %v1097 = vpop.f32.mrb[0].mxu0
        %v1098 = vadd.f32 0.0, %v1097
        %v1099 = vpop.f32.mrb[0].mxu0
        %1100 = vdwg.mxu0
        %v1101 = vpack.c.bf16 %v1025, %v1025
        %v1102 = vpack.c.bf16 %v1098, %v1098
        %v1119 = vunpack.c.l.b16 %v692
        %v1120 = vunpack.c.l.b16 %v694
        %v1121 = vunpack.c.l.b16 %v696
        %v1122 = vunpack.c.l.b16 %v698
        %v1123 = vunpack.c.l.b16 %v700
        %v1124 = vunpack.c.l.b16 %v702
        %v1125 = vunpack.c.l.b16 %v704
        %v1126 = vunpack.c.l.b16 %v706
        %v1127 = vunpack.c.l.b16 %v708
        %v1128 = vunpack.c.l.b16 %v710
        %v1129 = vunpack.c.l.b16 %v712
        %v1130 = vunpack.c.l.b16 %v714
        %v1131 = vunpack.c.l.b16 %v716
        %v1132 = vunpack.c.l.b16 %v718
        %v1133 = vunpack.c.l.b16 %v720
        %v1134 = vunpack.c.l.b16 %v722
        %v1135 = vpack.c.b16 %v1120, %v1119
        %v1136 = vpack.c.b16 %v1122, %v1121
        %v1137 = vpack.c.b16 %v1124, %v1123
        %v1138 = vpack.c.b16 %v1126, %v1125
        %v1139 = vpack.c.b16 %v1128, %v1127
        %v1140 = vpack.c.b16 %v1130, %v1129
        %v1141 = vpack.c.b16 %v1132, %v1131
        %v1142 = vpack.c.b16 %v1134, %v1133
        %1151 = vmatprep.subr.bf16.mxu0 0
        %1152 = vmatpush1.bf16.msra.mxu0 %v1135
        %1153 = vmatprep.subr.bf16.mxu0 0
        %1154 = vmatpush1.bf16.msra.mxu0 %v1136
        %1155 = vmatprep.subr.bf16.mxu0 0
        %1156 = vmatpush1.bf16.msra.mxu0 %v1137
        %1157 = vmatprep.subr.bf16.mxu0 0
        %1158 = vmatpush1.bf16.msra.mxu0 %v1138
        %1159 = vmatprep.subr.bf16.mxu0 0
        %1160 = vmatpush1.bf16.msra.mxu0 %v1139
        %1161 = vmatprep.subr.bf16.mxu0 0
        %1162 = vmatpush1.bf16.msra.mxu0 %v1140
        %1163 = vmatprep.subr.bf16.mxu0 0
        %1164 = vmatpush1.bf16.msra.mxu0 %v1141
        %1165 = vmatprep.subr.bf16.mxu0 0
        %1166 = vmatpush1.bf16.msra.mxu0 %v1142
        %1167 = vmatprep.subr.bf16.mxu0 0
        %1168 = vmatpush1.bf16.msra.mxu0 0
        %1169 = vmatprep.subr.bf16.mxu0 0
        %1170 = vmatpush1.bf16.msra.mxu0 0
        %1171 = vmatprep.subr.bf16.mxu0 0
        %1172 = vmatpush1.bf16.msra.mxu0 0
        %1173 = vmatprep.subr.bf16.mxu0 0
        %1174 = vmatpush1.bf16.msra.mxu0 0
        %1175 = vmatprep.subr.bf16.mxu0 0
        %1176 = vmatpush1.bf16.msra.mxu0 0
        %1177 = vmatprep.subr.bf16.mxu0 0
        %1178 = vmatpush1.bf16.msra.mxu0 0
        %1179 = vmatprep.subr.bf16.mxu0 0
        %1180 = vmatpush1.bf16.msra.mxu0 0
        %1181 = vmatprep.subr.bf16.mxu0 0
        %1182 = vmatpush1.bf16.msra.mxu0 0
        %1183 = vmatprep.mubr.bf16.mxu0 0
        %1184 = vmatmul.mubr.bf16.gmra.mrb[0].mxu0 %v1102
        %v1185 = vpop.f32.mrb[0].mxu0
        %v1186 = vadd.f32 0.0, %v1185
        %v1187 = vpop.f32.mrb[0].mxu0
        %v1188 = vpop.f32.mrb[0].mxu0
        %v1189 = vpop.f32.mrb[0].mxu0
        %1190 = vdwg.mxu0
        %v1207 = vunpack.c.l.b16 %v660
        %v1208 = vunpack.c.l.b16 %v662
        %v1209 = vunpack.c.l.b16 %v664
        %v1210 = vunpack.c.l.b16 %v666
        %v1211 = vunpack.c.l.b16 %v668
        %v1212 = vunpack.c.l.b16 %v670
        %v1213 = vunpack.c.l.b16 %v672
        %v1214 = vunpack.c.l.b16 %v674
        %v1215 = vunpack.c.l.b16 %v676
        %v1216 = vunpack.c.l.b16 %v678
        %v1217 = vunpack.c.l.b16 %v680
        %v1218 = vunpack.c.l.b16 %v682
        %v1219 = vunpack.c.l.b16 %v684
        %v1220 = vunpack.c.l.b16 %v686
        %v1221 = vunpack.c.l.b16 %v688
        %v1222 = vunpack.c.l.b16 %v690
        %v1223 = vpack.c.b16 %v1208, %v1207
        %v1224 = vpack.c.b16 %v1210, %v1209
        %v1225 = vpack.c.b16 %v1212, %v1211
        %v1226 = vpack.c.b16 %v1214, %v1213
        %v1227 = vpack.c.b16 %v1216, %v1215
        %v1228 = vpack.c.b16 %v1218, %v1217
        %v1229 = vpack.c.b16 %v1220, %v1219
        %v1230 = vpack.c.b16 %v1222, %v1221
        %1239 = vmatprep.subr.bf16.mxu0 0
        %1240 = vmatpush1.bf16.msra.mxu0 %v1223
        %1241 = vmatprep.subr.bf16.mxu0 0
        %1242 = vmatpush1.bf16.msra.mxu0 %v1224
        %1243 = vmatprep.subr.bf16.mxu0 0
        %1244 = vmatpush1.bf16.msra.mxu0 %v1225
        %1245 = vmatprep.subr.bf16.mxu0 0
        %1246 = vmatpush1.bf16.msra.mxu0 %v1226
        %1247 = vmatprep.subr.bf16.mxu0 0
        %1248 = vmatpush1.bf16.msra.mxu0 %v1227
        %1249 = vmatprep.subr.bf16.mxu0 0
        %1250 = vmatpush1.bf16.msra.mxu0 %v1228
        %1251 = vmatprep.subr.bf16.mxu0 0
        %1252 = vmatpush1.bf16.msra.mxu0 %v1229
        %1253 = vmatprep.subr.bf16.mxu0 0
        %1254 = vmatpush1.bf16.msra.mxu0 %v1230
        %1255 = vmatprep.subr.bf16.mxu0 0
        %1256 = vmatpush1.bf16.msra.mxu0 0
        %1257 = vmatprep.subr.bf16.mxu0 0
        %1258 = vmatpush1.bf16.msra.mxu0 0
        %1259 = vmatprep.subr.bf16.mxu0 0
        %1260 = vmatpush1.bf16.msra.mxu0 0
        %1261 = vmatprep.subr.bf16.mxu0 0
        %1262 = vmatpush1.bf16.msra.mxu0 0
        %1263 = vmatprep.subr.bf16.mxu0 0
        %1264 = vmatpush1.bf16.msra.mxu0 0
        %1265 = vmatprep.subr.bf16.mxu0 0
        %1266 = vmatpush1.bf16.msra.mxu0 0
        %1267 = vmatprep.subr.bf16.mxu0 0
        %1268 = vmatpush1.bf16.msra.mxu0 0
        %1269 = vmatprep.subr.bf16.mxu0 0
        %1270 = vmatpush1.bf16.msra.mxu0 0
        %1271 = vmatprep.mubr.bf16.mxu0 0
        %1272 = vmatmul.mubr.bf16.gmra.mrb[0].mxu0 %v1101
        %v1273 = vpop.f32.mrb[0].mxu0
        %v1274 = vadd.f32 %v1186, %v1273
        %v1275 = vpop.f32.mrb[0].mxu0
        %v1276 = vpop.f32.mrb[0].mxu0
        %v1277 = vpop.f32.mrb[0].mxu0
        %1278 = vdwg.mxu0
        %v1295 = vunpack.c.l.b16 %v724
        %v1296 = vunpack.c.l.b16 %v726
        %v1297 = vunpack.c.l.b16 %v728
        %v1298 = vunpack.c.l.b16 %v730
        %v1299 = vunpack.c.l.b16 %v732
        %v1300 = vunpack.c.l.b16 %v734
        %v1301 = vunpack.c.l.b16 %v736
        %v1302 = vunpack.c.l.b16 %v738
        %v1303 = vunpack.c.l.b16 %v740
        %v1304 = vunpack.c.l.b16 %v742
        %v1305 = vunpack.c.l.b16 %v744
        %v1306 = vunpack.c.l.b16 %v746
        %v1307 = vunpack.c.l.b16 %v748
        %v1308 = vunpack.c.l.b16 %v750
        %v1309 = vunpack.c.l.b16 %v752
        %v1310 = vunpack.c.l.b16 %v754
        %v1311 = vpack.c.b16 %v1296, %v1295
        %v1312 = vpack.c.b16 %v1298, %v1297
        %v1313 = vpack.c.b16 %v1300, %v1299
        %v1314 = vpack.c.b16 %v1302, %v1301
        %v1315 = vpack.c.b16 %v1304, %v1303
        %v1316 = vpack.c.b16 %v1306, %v1305
        %v1317 = vpack.c.b16 %v1308, %v1307
        %v1318 = vpack.c.b16 %v1310, %v1309
        %1327 = vmatprep.subr.bf16.mxu0 0
        %1328 = vmatpush1.bf16.msra.mxu0 %v1311
        %1329 = vmatprep.subr.bf16.mxu0 0
        %1330 = vmatpush1.bf16.msra.mxu0 %v1312
        %1331 = vmatprep.subr.bf16.mxu0 0
        %1332 = vmatpush1.bf16.msra.mxu0 %v1313
        %1333 = vmatprep.subr.bf16.mxu0 0
        %1334 = vmatpush1.bf16.msra.mxu0 %v1314
        %1335 = vmatprep.subr.bf16.mxu0 0
        %1336 = vmatpush1.bf16.msra.mxu0 %v1315
        %1337 = vmatprep.subr.bf16.mxu0 0
        %1338 = vmatpush1.bf16.msra.mxu0 %v1316
        %1339 = vmatprep.subr.bf16.mxu0 0
        %1340 = vmatpush1.bf16.msra.mxu0 %v1317
        %1341 = vmatprep.subr.bf16.mxu0 0
        %1342 = vmatpush1.bf16.msra.mxu0 %v1318
        %1343 = vmatprep.subr.bf16.mxu0 0
        %1344 = vmatpush1.bf16.msra.mxu0 0
        %1345 = vmatprep.subr.bf16.mxu0 0
        %1346 = vmatpush1.bf16.msra.mxu0 0
        %1347 = vmatprep.subr.bf16.mxu0 0
        %1348 = vmatpush1.bf16.msra.mxu0 0
        %1349 = vmatprep.subr.bf16.mxu0 0
        %1350 = vmatpush1.bf16.msra.mxu0 0
        %1351 = vmatprep.subr.bf16.mxu0 0
        %1352 = vmatpush1.bf16.msra.mxu0 0
        %1353 = vmatprep.subr.bf16.mxu0 0
        %1354 = vmatpush1.bf16.msra.mxu0 0
        %1355 = vmatprep.subr.bf16.mxu0 0
        %1356 = vmatpush1.bf16.msra.mxu0 0
        %1357 = vmatprep.subr.bf16.mxu0 0
        %1358 = vmatpush1.bf16.msra.mxu0 0
        %1359 = vmatprep.mubr.bf16.mxu0 0
        %1360 = vmatmul.mubr.bf16.gmra.mrb[0].mxu0 %v765
        %v1361 = vpop.f32.mrb[0].mxu0
        %v1362 = vadd.f32 0.0, %v1361
        %v1363 = vpop.f32.mrb[0].mxu0
        %v1364 = vpop.f32.mrb[0].mxu0
        %v1365 = vpop.f32.mrb[0].mxu0
        %1366 = vdwg.mxu0
        %v1367 = vadd.f32 %v1274, %v1362
        %v1369 = vlaneseq
        %v1370 = vshrl.u32 %v1369, 7
        %v1371 = vsub.s32 0, %v1370
        %v1372 = vrot.slane %v758, %v1371
        %v1374 = vadd.f32 %v1367, %v1372
        %v1375 = vxor.u32 %v1374, 2147483648
        %v1376 = vmul.f32 %v1375, 1.442695
        %v1377 = vpow.pop %v1376
        %v1378 = vadd.f32 %v1377, 1.0
        %v1379 = vrcp.pop %v1378
        %v1380 = vmul.f32 1.0, %v1379
        %v1381 = vunpack.c.h.b16 %v692
        %v1382 = vunpack.c.h.b16 %v694
        %v1383 = vunpack.c.h.b16 %v696
        %v1384 = vunpack.c.h.b16 %v698
        %v1385 = vunpack.c.h.b16 %v700
        %v1386 = vunpack.c.h.b16 %v702
        %v1387 = vunpack.c.h.b16 %v704
        %v1388 = vunpack.c.h.b16 %v706
        %v1389 = vunpack.c.h.b16 %v708
        %v1390 = vunpack.c.h.b16 %v710
        %v1391 = vunpack.c.h.b16 %v712
        %v1392 = vunpack.c.h.b16 %v714
        %v1393 = vunpack.c.h.b16 %v716
        %v1394 = vunpack.c.h.b16 %v718
        %v1395 = vunpack.c.h.b16 %v720
        %v1396 = vunpack.c.h.b16 %v722
        %v1397 = vpack.c.b16 %v1382, %v1381
        %v1398 = vpack.c.b16 %v1384, %v1383
        %v1399 = vpack.c.b16 %v1386, %v1385
        %v1400 = vpack.c.b16 %v1388, %v1387
        %v1401 = vpack.c.b16 %v1390, %v1389
        %v1402 = vpack.c.b16 %v1392, %v1391
        %v1403 = vpack.c.b16 %v1394, %v1393
        %v1404 = vpack.c.b16 %v1396, %v1395
        %1413 = vmatprep.subr.bf16.mxu0 0
        %1414 = vmatpush1.bf16.msra.mxu0 %v1397
        %1415 = vmatprep.subr.bf16.mxu0 0
        %1416 = vmatpush1.bf16.msra.mxu0 %v1398
        %1417 = vmatprep.subr.bf16.mxu0 0
        %1418 = vmatpush1.bf16.msra.mxu0 %v1399
        %1419 = vmatprep.subr.bf16.mxu0 0
        %1420 = vmatpush1.bf16.msra.mxu0 %v1400
        %1421 = vmatprep.subr.bf16.mxu0 0
        %1422 = vmatpush1.bf16.msra.mxu0 %v1401
        %1423 = vmatprep.subr.bf16.mxu0 0
        %1424 = vmatpush1.bf16.msra.mxu0 %v1402
        %1425 = vmatprep.subr.bf16.mxu0 0
        %1426 = vmatpush1.bf16.msra.mxu0 %v1403
        %1427 = vmatprep.subr.bf16.mxu0 0
        %1428 = vmatpush1.bf16.msra.mxu0 %v1404
        %1429 = vmatprep.subr.bf16.mxu0 0
        %1430 = vmatpush1.bf16.msra.mxu0 0
        %1431 = vmatprep.subr.bf16.mxu0 0
        %1432 = vmatpush1.bf16.msra.mxu0 0
        %1433 = vmatprep.subr.bf16.mxu0 0
        %1434 = vmatpush1.bf16.msra.mxu0 0
        %1435 = vmatprep.subr.bf16.mxu0 0
        %1436 = vmatpush1.bf16.msra.mxu0 0
        %1437 = vmatprep.subr.bf16.mxu0 0
        %1438 = vmatpush1.bf16.msra.mxu0 0
        %1439 = vmatprep.subr.bf16.mxu0 0
        %1440 = vmatpush1.bf16.msra.mxu0 0
        %1441 = vmatprep.subr.bf16.mxu0 0
        %1442 = vmatpush1.bf16.msra.mxu0 0
        %1443 = vmatprep.subr.bf16.mxu0 0
        %1444 = vmatpush1.bf16.msra.mxu0 0
        %1445 = vmatprep.mubr.bf16.mxu0 0
        %1446 = vmatmul.mubr.bf16.gmra.mrb[0].mxu0 %v1102
        %v1447 = vpop.f32.mrb[0].mxu0
        %v1448 = vadd.f32 0.0, %v1447
        %v1449 = vpop.f32.mrb[0].mxu0
        %v1450 = vpop.f32.mrb[0].mxu0
        %v1451 = vpop.f32.mrb[0].mxu0
        %1452 = vdwg.mxu0
        %v1453 = vunpack.c.h.b16 %v660
        %v1454 = vunpack.c.h.b16 %v662
        %v1455 = vunpack.c.h.b16 %v664
        %v1456 = vunpack.c.h.b16 %v666
        %v1457 = vunpack.c.h.b16 %v668
        %v1458 = vunpack.c.h.b16 %v670
        %v1459 = vunpack.c.h.b16 %v672
        %v1460 = vunpack.c.h.b16 %v674
        %v1461 = vunpack.c.h.b16 %v676
        %v1462 = vunpack.c.h.b16 %v678
        %v1463 = vunpack.c.h.b16 %v680
        %v1464 = vunpack.c.h.b16 %v682
        %v1465 = vunpack.c.h.b16 %v684
        %v1466 = vunpack.c.h.b16 %v686
        %v1467 = vunpack.c.h.b16 %v688
        %v1468 = vunpack.c.h.b16 %v690
        %v1469 = vpack.c.b16 %v1454, %v1453
        %v1470 = vpack.c.b16 %v1456, %v1455
        %v1471 = vpack.c.b16 %v1458, %v1457
        %v1472 = vpack.c.b16 %v1460, %v1459
        %v1473 = vpack.c.b16 %v1462, %v1461
        %v1474 = vpack.c.b16 %v1464, %v1463
        %v1475 = vpack.c.b16 %v1466, %v1465
        %v1476 = vpack.c.b16 %v1468, %v1467
        %1485 = vmatprep.subr.bf16.mxu0 0
        %1486 = vmatpush1.bf16.msra.mxu0 %v1469
        %1487 = vmatprep.subr.bf16.mxu0 0
        %1488 = vmatpush1.bf16.msra.mxu0 %v1470
        %1489 = vmatprep.subr.bf16.mxu0 0
        %1490 = vmatpush1.bf16.msra.mxu0 %v1471
        %1491 = vmatprep.subr.bf16.mxu0 0
        %1492 = vmatpush1.bf16.msra.mxu0 %v1472
        %1493 = vmatprep.subr.bf16.mxu0 0
        %1494 = vmatpush1.bf16.msra.mxu0 %v1473
        %1495 = vmatprep.subr.bf16.mxu0 0
        %1496 = vmatpush1.bf16.msra.mxu0 %v1474
        %1497 = vmatprep.subr.bf16.mxu0 0
        %1498 = vmatpush1.bf16.msra.mxu0 %v1475
        %1499 = vmatprep.subr.bf16.mxu0 0
        %1500 = vmatpush1.bf16.msra.mxu0 %v1476
        %1501 = vmatprep.subr.bf16.mxu0 0
        %1502 = vmatpush1.bf16.msra.mxu0 0
        %1503 = vmatprep.subr.bf16.mxu0 0
        %1504 = vmatpush1.bf16.msra.mxu0 0
        %1505 = vmatprep.subr.bf16.mxu0 0
        %1506 = vmatpush1.bf16.msra.mxu0 0
        %1507 = vmatprep.subr.bf16.mxu0 0
        %1508 = vmatpush1.bf16.msra.mxu0 0
        %1509 = vmatprep.subr.bf16.mxu0 0
        %1510 = vmatpush1.bf16.msra.mxu0 0
        %1511 = vmatprep.subr.bf16.mxu0 0
        %1512 = vmatpush1.bf16.msra.mxu0 0
        %1513 = vmatprep.subr.bf16.mxu0 0
        %1514 = vmatpush1.bf16.msra.mxu0 0
        %1515 = vmatprep.subr.bf16.mxu0 0
        %1516 = vmatpush1.bf16.msra.mxu0 0
        %1517 = vmatprep.mubr.bf16.mxu0 0
        %1518 = vmatmul.mubr.bf16.gmra.mrb[0].mxu0 %v1101
        %v1519 = vpop.f32.mrb[0].mxu0
        %v1520 = vadd.f32 %v1448, %v1519
        %v1521 = vpop.f32.mrb[0].mxu0
        %v1522 = vpop.f32.mrb[0].mxu0
        %v1523 = vpop.f32.mrb[0].mxu0
        %1524 = vdwg.mxu0
        %v1525 = vunpack.c.h.b16 %v724
        %v1526 = vunpack.c.h.b16 %v726
        %v1527 = vunpack.c.h.b16 %v728
        %v1528 = vunpack.c.h.b16 %v730
        %v1529 = vunpack.c.h.b16 %v732
        %v1530 = vunpack.c.h.b16 %v734
        %v1531 = vunpack.c.h.b16 %v736
        %v1532 = vunpack.c.h.b16 %v738
        %v1533 = vunpack.c.h.b16 %v740
        %v1534 = vunpack.c.h.b16 %v742
        %v1535 = vunpack.c.h.b16 %v744
        %v1536 = vunpack.c.h.b16 %v746
        %v1537 = vunpack.c.h.b16 %v748
        %v1538 = vunpack.c.h.b16 %v750
        %v1539 = vunpack.c.h.b16 %v752
        %v1540 = vunpack.c.h.b16 %v754
        %v1541 = vpack.c.b16 %v1526, %v1525
        %v1542 = vpack.c.b16 %v1528, %v1527
        %v1543 = vpack.c.b16 %v1530, %v1529
        %v1544 = vpack.c.b16 %v1532, %v1531
        %v1545 = vpack.c.b16 %v1534, %v1533
        %v1546 = vpack.c.b16 %v1536, %v1535
        %v1547 = vpack.c.b16 %v1538, %v1537
        %v1548 = vpack.c.b16 %v1540, %v1539
        %1557 = vmatprep.subr.bf16.mxu0 0
        %1558 = vmatpush1.bf16.msra.mxu0 %v1541
        %1559 = vmatprep.subr.bf16.mxu0 0
        %1560 = vmatpush1.bf16.msra.mxu0 %v1542
        %1561 = vmatprep.subr.bf16.mxu0 0
        %1562 = vmatpush1.bf16.msra.mxu0 %v1543
        %1563 = vmatprep.subr.bf16.mxu0 0
        %1564 = vmatpush1.bf16.msra.mxu0 %v1544
        %1565 = vmatprep.subr.bf16.mxu0 0
        %1566 = vmatpush1.bf16.msra.mxu0 %v1545
        %1567 = vmatprep.subr.bf16.mxu0 0
        %1568 = vmatpush1.bf16.msra.mxu0 %v1546
        %1569 = vmatprep.subr.bf16.mxu0 0
        %1570 = vmatpush1.bf16.msra.mxu0 %v1547
        %1571 = vmatprep.subr.bf16.mxu0 0
        %1572 = vmatpush1.bf16.msra.mxu0 %v1548
        %1573 = vmatprep.subr.bf16.mxu0 0
        %1574 = vmatpush1.bf16.msra.mxu0 0
        %1575 = vmatprep.subr.bf16.mxu0 0
        %1576 = vmatpush1.bf16.msra.mxu0 0
        %1577 = vmatprep.subr.bf16.mxu0 0
        %1578 = vmatpush1.bf16.msra.mxu0 0
        %1579 = vmatprep.subr.bf16.mxu0 0
        %1580 = vmatpush1.bf16.msra.mxu0 0
        %1581 = vmatprep.subr.bf16.mxu0 0
        %1582 = vmatpush1.bf16.msra.mxu0 0
        %1583 = vmatprep.subr.bf16.mxu0 0
        %1584 = vmatpush1.bf16.msra.mxu0 0
        %1585 = vmatprep.subr.bf16.mxu0 0
        %1586 = vmatpush1.bf16.msra.mxu0 0
        %1587 = vmatprep.subr.bf16.mxu0 0
        %1588 = vmatpush1.bf16.msra.mxu0 0
        %1589 = vmatprep.mubr.bf16.mxu0 0
        %1590 = vmatmul.mubr.bf16.gmra.mrb[0].mxu0 %v765
        %v1591 = vpop.f32.mrb[0].mxu0
        %v1592 = vadd.f32 0.0, %v1591
        %v1593 = vpop.f32.mrb[0].mxu0
        %v1594 = vpop.f32.mrb[0].mxu0
        %v1595 = vpop.f32.mrb[0].mxu0
        %1596 = vdwg.mxu0
        %v1597 = vadd.f32 %v1520, %v1592
        %v1599 = vlaneseq
        %v1600 = vshrl.u32 %v1599, 7
        %v1601 = vsub.s32 0, %v1600
        %v1602 = vrot.slane %v759, %v1601
        %v1604 = vadd.f32 %v1597, %v1602
        %v1605 = vxor.u32 %v1604, 2147483648
        %v1606 = vmul.f32 %v1605, 1.442695
        %v1607 = vpow.pop %v1606
        %v1608 = vadd.f32 %v1607, 1.0
        %v1609 = vrcp.pop %v1608
        %v1610 = vmul.f32 1.0, %v1609
        %v1627 = vunpack.c.l.b16 %v693
        %v1628 = vunpack.c.l.b16 %v695
        %v1629 = vunpack.c.l.b16 %v697
        %v1630 = vunpack.c.l.b16 %v699
        %v1631 = vunpack.c.l.b16 %v701
        %v1632 = vunpack.c.l.b16 %v703
        %v1633 = vunpack.c.l.b16 %v705
        %v1634 = vunpack.c.l.b16 %v707
        %v1635 = vunpack.c.l.b16 %v709
        %v1636 = vunpack.c.l.b16 %v711
        %v1637 = vunpack.c.l.b16 %v713
        %v1638 = vunpack.c.l.b16 %v715
        %v1639 = vunpack.c.l.b16 %v717
        %v1640 = vunpack.c.l.b16 %v719
        %v1641 = vunpack.c.l.b16 %v721
        %v1642 = vunpack.c.l.b16 %v723
        %v1643 = vpack.c.b16 %v1628, %v1627
        %v1644 = vpack.c.b16 %v1630, %v1629
        %v1645 = vpack.c.b16 %v1632, %v1631
        %v1646 = vpack.c.b16 %v1634, %v1633
        %v1647 = vpack.c.b16 %v1636, %v1635
        %v1648 = vpack.c.b16 %v1638, %v1637
        %v1649 = vpack.c.b16 %v1640, %v1639
        %v1650 = vpack.c.b16 %v1642, %v1641
        %1659 = vmatprep.subr.bf16.mxu0 0
        %1660 = vmatpush1.bf16.msra.mxu0 %v1643
        %1661 = vmatprep.subr.bf16.mxu0 0
        %1662 = vmatpush1.bf16.msra.mxu0 %v1644
        %1663 = vmatprep.subr.bf16.mxu0 0
        %1664 = vmatpush1.bf16.msra.mxu0 %v1645
        %1665 = vmatprep.subr.bf16.mxu0 0
        %1666 = vmatpush1.bf16.msra.mxu0 %v1646
        %1667 = vmatprep.subr.bf16.mxu0 0
        %1668 = vmatpush1.bf16.msra.mxu0 %v1647
        %1669 = vmatprep.subr.bf16.mxu0 0
        %1670 = vmatpush1.bf16.msra.mxu0 %v1648
        %1671 = vmatprep.subr.bf16.mxu0 0
        %1672 = vmatpush1.bf16.msra.mxu0 %v1649
        %1673 = vmatprep.subr.bf16.mxu0 0
        %1674 = vmatpush1.bf16.msra.mxu0 %v1650
        %1675 = vmatprep.subr.bf16.mxu0 0
        %1676 = vmatpush1.bf16.msra.mxu0 0
        %1677 = vmatprep.subr.bf16.mxu0 0
        %1678 = vmatpush1.bf16.msra.mxu0 0
        %1679 = vmatprep.subr.bf16.mxu0 0
        %1680 = vmatpush1.bf16.msra.mxu0 0
        %1681 = vmatprep.subr.bf16.mxu0 0
        %1682 = vmatpush1.bf16.msra.mxu0 0
        %1683 = vmatprep.subr.bf16.mxu0 0
        %1684 = vmatpush1.bf16.msra.mxu0 0
        %1685 = vmatprep.subr.bf16.mxu0 0
        %1686 = vmatpush1.bf16.msra.mxu0 0
        %1687 = vmatprep.subr.bf16.mxu0 0
        %1688 = vmatpush1.bf16.msra.mxu0 0
        %1689 = vmatprep.subr.bf16.mxu0 0
        %1690 = vmatpush1.bf16.msra.mxu0 0
        %1691 = vmatprep.mubr.bf16.mxu0 0
        %1692 = vmatmul.mubr.bf16.gmra.mrb[0].mxu0 %v1102
        %v1693 = vpop.f32.mrb[0].mxu0
        %v1694 = vadd.f32 0.0, %v1693
        %v1695 = vpop.f32.mrb[0].mxu0
        %v1696 = vpop.f32.mrb[0].mxu0
        %v1697 = vpop.f32.mrb[0].mxu0
        %1698 = vdwg.mxu0
        %v1715 = vunpack.c.l.b16 %v661
        %v1716 = vunpack.c.l.b16 %v663
        %v1717 = vunpack.c.l.b16 %v665
        %v1718 = vunpack.c.l.b16 %v667
        %v1719 = vunpack.c.l.b16 %v669
        %v1720 = vunpack.c.l.b16 %v671
        %v1721 = vunpack.c.l.b16 %v673
        %v1722 = vunpack.c.l.b16 %v675
        %v1723 = vunpack.c.l.b16 %v677
        %v1724 = vunpack.c.l.b16 %v679
        %v1725 = vunpack.c.l.b16 %v681
        %v1726 = vunpack.c.l.b16 %v683
        %v1727 = vunpack.c.l.b16 %v685
        %v1728 = vunpack.c.l.b16 %v687
        %v1729 = vunpack.c.l.b16 %v689
        %v1730 = vunpack.c.l.b16 %v691
        %v1731 = vpack.c.b16 %v1716, %v1715
        %v1732 = vpack.c.b16 %v1718, %v1717
        %v1733 = vpack.c.b16 %v1720, %v1719
        %v1734 = vpack.c.b16 %v1722, %v1721
        %v1735 = vpack.c.b16 %v1724, %v1723
        %v1736 = vpack.c.b16 %v1726, %v1725
        %v1737 = vpack.c.b16 %v1728, %v1727
        %v1738 = vpack.c.b16 %v1730, %v1729
        %1747 = vmatprep.subr.bf16.mxu0 0
        %1748 = vmatpush1.bf16.msra.mxu0 %v1731
        %1749 = vmatprep.subr.bf16.mxu0 0
        %1750 = vmatpush1.bf16.msra.mxu0 %v1732
        %1751 = vmatprep.subr.bf16.mxu0 0
        %1752 = vmatpush1.bf16.msra.mxu0 %v1733
        %1753 = vmatprep.subr.bf16.mxu0 0
        %1754 = vmatpush1.bf16.msra.mxu0 %v1734
        %1755 = vmatprep.subr.bf16.mxu0 0
        %1756 = vmatpush1.bf16.msra.mxu0 %v1735
        %1757 = vmatprep.subr.bf16.mxu0 0
        %1758 = vmatpush1.bf16.msra.mxu0 %v1736
        %1759 = vmatprep.subr.bf16.mxu0 0
        %1760 = vmatpush1.bf16.msra.mxu0 %v1737
        %1761 = vmatprep.subr.bf16.mxu0 0
        %1762 = vmatpush1.bf16.msra.mxu0 %v1738
        %1763 = vmatprep.subr.bf16.mxu0 0
        %1764 = vmatpush1.bf16.msra.mxu0 0
        %1765 = vmatprep.subr.bf16.mxu0 0
        %1766 = vmatpush1.bf16.msra.mxu0 0
        %1767 = vmatprep.subr.bf16.mxu0 0
        %1768 = vmatpush1.bf16.msra.mxu0 0
        %1769 = vmatprep.subr.bf16.mxu0 0
        %1770 = vmatpush1.bf16.msra.mxu0 0
        %1771 = vmatprep.subr.bf16.mxu0 0
        %1772 = vmatpush1.bf16.msra.mxu0 0
        %1773 = vmatprep.subr.bf16.mxu0 0
        %1774 = vmatpush1.bf16.msra.mxu0 0
        %1775 = vmatprep.subr.bf16.mxu0 0
        %1776 = vmatpush1.bf16.msra.mxu0 0
        %1777 = vmatprep.subr.bf16.mxu0 0
        %1778 = vmatpush1.bf16.msra.mxu0 0
        %1779 = vmatprep.mubr.bf16.mxu0 0
        %1780 = vmatmul.mubr.bf16.gmra.mrb[0].mxu0 %v1101
        %v1781 = vpop.f32.mrb[0].mxu0
        %v1782 = vadd.f32 %v1694, %v1781
        %v1783 = vpop.f32.mrb[0].mxu0
        %v1784 = vpop.f32.mrb[0].mxu0
        %v1785 = vpop.f32.mrb[0].mxu0
        %1786 = vdwg.mxu0
        %v1788 = vlaneseq
        %v1789 = vshrl.u32 %v1788, 7
        %v1790 = vsub.s32 0, %v1789
        %v1791 = vrot.slane %v760, %v1790
        %v1793 = vadd.f32 %v1782, %v1791
        %v1795 = vlaneseq
        %v1796 = vshrl.u32 %v1795, 7
        %v1797 = vsub.s32 0, %v1796
        %v1798 = vrot.slane %v761, %v1797
        %v1816 = vunpack.c.l.b16 %v725
        %v1817 = vunpack.c.l.b16 %v727
        %v1818 = vunpack.c.l.b16 %v729
        %v1819 = vunpack.c.l.b16 %v731
        %v1820 = vunpack.c.l.b16 %v733
        %v1821 = vunpack.c.l.b16 %v735
        %v1822 = vunpack.c.l.b16 %v737
        %v1823 = vunpack.c.l.b16 %v739
        %v1824 = vunpack.c.l.b16 %v741
        %v1825 = vunpack.c.l.b16 %v743
        %v1826 = vunpack.c.l.b16 %v745
        %v1827 = vunpack.c.l.b16 %v747
        %v1828 = vunpack.c.l.b16 %v749
        %v1829 = vunpack.c.l.b16 %v751
        %v1830 = vunpack.c.l.b16 %v753
        %v1831 = vunpack.c.l.b16 %v755
        %v1832 = vpack.c.b16 %v1817, %v1816
        %v1833 = vpack.c.b16 %v1819, %v1818
        %v1834 = vpack.c.b16 %v1821, %v1820
        %v1835 = vpack.c.b16 %v1823, %v1822
        %v1836 = vpack.c.b16 %v1825, %v1824
        %v1837 = vpack.c.b16 %v1827, %v1826
        %v1838 = vpack.c.b16 %v1829, %v1828
        %v1839 = vpack.c.b16 %v1831, %v1830
        %1848 = vmatprep.subr.bf16.mxu0 0
        %1849 = vmatpush1.bf16.msra.mxu0 %v1832
        %1850 = vmatprep.subr.bf16.mxu0 0
        %1851 = vmatpush1.bf16.msra.mxu0 %v1833
        %1852 = vmatprep.subr.bf16.mxu0 0
        %1853 = vmatpush1.bf16.msra.mxu0 %v1834
        %1854 = vmatprep.subr.bf16.mxu0 0
        %1855 = vmatpush1.bf16.msra.mxu0 %v1835
        %1856 = vmatprep.subr.bf16.mxu0 0
        %1857 = vmatpush1.bf16.msra.mxu0 %v1836
        %1858 = vmatprep.subr.bf16.mxu0 0
        %1859 = vmatpush1.bf16.msra.mxu0 %v1837
        %1860 = vmatprep.subr.bf16.mxu0 0
        %1861 = vmatpush1.bf16.msra.mxu0 %v1838
        %1862 = vmatprep.subr.bf16.mxu0 0
        %1863 = vmatpush1.bf16.msra.mxu0 %v1839
        %1864 = vmatprep.subr.bf16.mxu0 0
        %1865 = vmatpush1.bf16.msra.mxu0 0
        %1866 = vmatprep.subr.bf16.mxu0 0
        %1867 = vmatpush1.bf16.msra.mxu0 0
        %1868 = vmatprep.subr.bf16.mxu0 0
        %1869 = vmatpush1.bf16.msra.mxu0 0
        %1870 = vmatprep.subr.bf16.mxu0 0
        %1871 = vmatpush1.bf16.msra.mxu0 0
        %1872 = vmatprep.subr.bf16.mxu0 0
        %1873 = vmatpush1.bf16.msra.mxu0 0
        %1874 = vmatprep.subr.bf16.mxu0 0
        %1875 = vmatpush1.bf16.msra.mxu0 0
        %1876 = vmatprep.subr.bf16.mxu0 0
        %1877 = vmatpush1.bf16.msra.mxu0 0
        %1878 = vmatprep.subr.bf16.mxu0 0
        %1879 = vmatpush1.bf16.msra.mxu0 0
        %1880 = vmatprep.mubr.bf16.mxu0 0
        %1881 = vmatmul.mubr.bf16.gmra.mrb[0].mxu0 %v765
        %v1882 = vpop.f32.mrb[0].mxu0
        %v1883 = vadd.f32 %v1798, %v1882
        %v1884 = vpop.f32.mrb[0].mxu0
        %v1885 = vpop.f32.mrb[0].mxu0
        %v1886 = vpop.f32.mrb[0].mxu0
        %1887 = vdwg.mxu0
        %v1888 = vmul.f32 %v1380, %v1883
        %v1889 = vadd.f32 %v1793, %v1888
        %v1890 = vtanh.pop %v1889
        %v1891 = vsub.f32 %v764, %v1890
        %v1892 = vmul.f32 %v1610, %v1891
        %v1893 = vadd.f32 %v1890, %v1892
        %1894 = vst [vmem:[%s626] sm:$0xff] %v1893
        %s1895 = sand.u32 %s354, 1
        %s1896 = scalar_lea.sflag [#allocation4], %s1895
        %s1897 = sand.u32 %s354, 1
        %s1898 = smul.addr %s1897, 8
        %s1899 = scalar_lea.vmem [#allocation16], %s1898
        // Predicated region
        $region109: #{tpu_custom_call.1} parent=75 // pred_check
          %p1900 = pneg %p364
        $region110: #{tpu_custom_call.1} parent=75 // pred_check_branch
          %1902 = sbr.rel (%p1900) target = $region112
        $region111: #{tpu_custom_call.1} parent=75 // pred_region
          %s1904 = ssub.s32 128, 128
          %1905 = vsyncadd %s1896, %s1904
          %s1906 = smul.addr %s37, 128
          %s1907 = scalar_lea.hbm %s14, %s1906
          %s1909 = sshll.u32 %s1899, 4
          %s1910 = int_to_ptr.vmem [resolvable:$true] %s1909
          %1912 = dma.vmem_to_hbm [thread:$0]  %s1910, 128, %s1907, %s1896
        $region112: #{tpu_custom_call.1} parent=75 // pred_fallthru
          _
      $region76: #{tpu_custom_call.1} parent=5 // pred_fallthru
        _
      %p1913 = scmp.le.s32.totalorder 2, %s32
      // Predicated region
      $region113: #{tpu_custom_call.1} parent=5 // pred_check
        %p1914 = pneg %p1913
      $region114: #{tpu_custom_call.1} parent=5 // pred_check_branch
        %1916 = sbr.rel (%p1914) target = $region116
      $region115: #{tpu_custom_call.1} parent=5 // pred_region
        %s1917 = ssub.s32 %s32, 2
        // Predicated region
        $region117: #{tpu_custom_call.1} parent=115 // pred_check
          %p1918 = pneg %p370
        $region118: #{tpu_custom_call.1} parent=115 // pred_check_branch
          %1920 = sbr.rel (%p1918) target = $region120
        $region119: #{tpu_custom_call.1} parent=115 // pred_region
          %s1921 = sand.u32 %s355, 1
          %s1922 = scalar_lea.sflag [#allocation4], %s1921
          %s1923 = sand.u32 %s355, 1
          %s1924 = smul.addr %s1923, 8
          %s1925 = scalar_lea.vmem [#allocation16], %s1924
          %1926 = dma.done %s1922, 128
        $region120: #{tpu_custom_call.1} parent=115 // pred_fallthru
          _
      $region116: #{tpu_custom_call.1} parent=5 // pred_fallthru
        _
    $region6: #{tpu_custom_call.1} parent=1 // loop_footer
      %s36 = sadd.s32 1, %s32
    $region7: #{tpu_custom_call.1} parent=1 // loop_footer_branch
      %31 = sbr.rel target = $region3
    $region8: #{tpu_custom_call.1} parent=1 // loop_exit
      _
    %1927 = vsyncpa [#allocation3], 1
    %s1928 = scalar_lea.sflag [#allocation3], 1
    %1929 = vsyncpa %s1928, 1
    %1930 = vsyncpa [#allocation6], 1
    %s1931 = scalar_lea.sflag [#allocation6], 1
    %1932 = vsyncpa %s1931, 1
    %1933 = vsyncpa [#allocation9], 1
    %1934 = vsyncpa [#allocation12], 1
    %1935 = vsyncpa [#allocation15], 1
    %1936 = vsyncpa [#allocation4], 1
    %s1937 = scalar_lea.sflag [#allocation4], 1
    %1938 = vsyncpa %s1937, 1

</llo_original>
